<compile_context>
chip_gen: v7x
topology: tpu7x:2x2x1
jax: 0.10.0
libtpu: 0.0.40
codegen_flags: <defaults>
</compile_context>

<pallas_src>
import math
import jax
import jax.numpy as jnp
from jax.experimental import pallas as pl
from jax.experimental.pallas import tpu as pltpu

# ---- problem sizes (small, consistent with the module) --------------------
B, LQ, LK = 2, 8, 8          # batch, query seq len, cond (kv) seq len
D = 32                       # inner_dim
C = 16                       # cond_dim
NUM_HEADS = 4
HEAD_DIM = D // NUM_HEADS
MLP_HIDDEN = int(D * 4.0)    # mlp_ratio = 4.0
EPS = 1e-6

# ---- packed-weight slab layout: (D, SLAB_COLS), 128-lane aligned segments --
CA_Q = 0            # (D, D)   cross-attn Q (scaled, transposed)
CA_O = 128          # (D, D)   cross-attn out proj (transposed)
SA_QKV = 256        # (D, 3D)  self-attn fused QKV (q scaled, transposed)
SA_O = 384          # (D, D)   self-attn out proj (transposed)
MLP1 = 512          # (D, MLP_HIDDEN) mlp first linear (transposed)
SLAB_COLS = 640


def _rmsnorm(v, w_row):
    # v: (L, D) f32, w_row: (1, D) f32
    ms = jnp.mean(v * v, axis=-1, keepdims=True)
    return v * jax.lax.rsqrt(ms + EPS) * w_row


def _block_kernel(x_ref, enc_ref, normw_ref, w_ref, ca_kvw_ref, mlp_w2_ref,
                  out_ref):
    x = x_ref[0].astype(jnp.float32)        # (LQ, D)
    enc = enc_ref[0].astype(jnp.float32)    # (LK, C)
    nw = normw_ref[...].astype(jnp.float32)  # (3, D)

    def split_heads(t):
        # (L, D) -> (H, L, HEAD_DIM): lane slices stacked on a new leading dim
        return jnp.stack(
            [t[:, h * HEAD_DIM:(h + 1) * HEAD_DIM] for h in range(NUM_HEADS)],
            axis=0)

    def attention(q, k, v, ow_t):
        # q: (LQ, D) already scaled; k, v: (LK, D); ow_t: (D, D) pre-transposed
        qh = split_heads(q)                                   # (H, LQ, HD)
        kh = split_heads(k)                                   # (H, LK, HD)
        vh = split_heads(v)                                   # (H, LK, HD)
        s = jnp.einsum('hqd,hkd->hqk', qh, kh,
                       preferred_element_type=jnp.float32)    # (H, LQ, LK)
        s = s - jnp.max(s, axis=-1, keepdims=True)
        p = jnp.exp(s)
        p = p * pl.reciprocal(jnp.sum(p, axis=-1, keepdims=True), approx=True)
        o = jnp.einsum('hqk,hkd->hqd', p, vh,
                       preferred_element_type=jnp.float32)    # (H, LQ, HD)
        o = jnp.concatenate([o[h] for h in range(NUM_HEADS)], axis=-1)  # (LQ, D)
        return jnp.dot(o, ow_t, preferred_element_type=jnp.float32)

    # ---- cross attention + residual (fused K/V proj, Q scale pre-folded) ----
    n1 = _rmsnorm(x, nw[0:1, :])
    q = jnp.dot(n1, w_ref[:, CA_Q:CA_Q + D],
                preferred_element_type=jnp.float32)                     # (LQ, D)
    kv = jnp.dot(enc, ca_kvw_ref[...],
                 preferred_element_type=jnp.float32)                    # (LK, 2D)
    x = x + attention(q, kv[:, :D], kv[:, D:], w_ref[:, CA_O:CA_O + D])

    # ---- self attention + residual (fused Q/K/V projection) ----
    n2 = _rmsnorm(x, nw[1:2, :])
    qkv = jnp.dot(n2, w_ref[:, SA_QKV:SA_QKV + 3 * D],
                  preferred_element_type=jnp.float32)                   # (LQ, 3D)
    x = x + attention(qkv[:, :D], qkv[:, D:2 * D], qkv[:, 2 * D:],
                      w_ref[:, SA_O:SA_O + D])

    # ---- MLP (Linear -> SiLU -> Linear) + residual ----
    n3 = _rmsnorm(x, nw[2:3, :])
    h = jnp.dot(n3, w_ref[:, MLP1:MLP1 + MLP_HIDDEN],
                preferred_element_type=jnp.float32)                     # (LQ, 128)
    h = h * jax.nn.sigmoid(h)   # SiLU
    x = x + jnp.dot(h, mlp_w2_ref[...], preferred_element_type=jnp.float32)

    out_ref[0] = x.astype(out_ref.dtype)


def prepare_params(p):
    """One-time host-side weight prep: transpose, fuse QKV, fold softmax scale,
    pack all (D, n) weights into one lane-aligned slab."""
    scale = 1.0 / math.sqrt(HEAD_DIM)
    slab = jnp.zeros((D, SLAB_COLS), jnp.float32)
    slab = slab.at[:, CA_Q:CA_Q + D].set((scale * p["ca_qw"]).T)
    slab = slab.at[:, CA_O:CA_O + D].set(p["ca_ow"].T)
    slab = slab.at[:, SA_QKV:SA_QKV + 3 * D].set(
        jnp.concatenate([scale * p["sa_qw"], p["sa_kw"], p["sa_vw"]], axis=0).T)
    slab = slab.at[:, SA_O:SA_O + D].set(p["sa_ow"].T)
    slab = slab.at[:, MLP1:MLP1 + MLP_HIDDEN].set(p["mlp_w1"].T)
    return {
        "norm_w": jnp.stack([p["n1w"], p["n2w"], p["n3w"]], axis=0),     # (3, D)
        "w_slab": slab,                                                  # (D, 640)
        "ca_kvw_t": jnp.concatenate([p["ca_kw"], p["ca_vw"]], axis=0).T,  # (C, 2D)
        "mlp_w2_t": p["mlp_w2"].T,                                       # (MLP_HIDDEN, D)
    }


def cross_attention_block(x, enc, prepped):
    """x: (B, LQ, D), enc: (B, LK, C), prepped: output of prepare_params."""
    def full_spec(shape):
        nd = len(shape)
        return pl.BlockSpec(shape, lambda b, _nd=nd: (0,) * _nd)

    in_specs = [
        pl.BlockSpec((1, LQ, D), lambda b: (b, 0, 0)),   # x
        pl.BlockSpec((1, LK, C), lambda b: (b, 0, 0)),   # enc
        full_spec((3, D)),                               # packed norm weights
        full_spec((D, SLAB_COLS)),                       # packed (D, n) weight slab
        full_spec((C, 2 * D)),                           # cross kv fused (T)
        full_spec((MLP_HIDDEN, D)),                      # mlp w2 (T)
    ]
    out_spec = pl.BlockSpec((1, LQ, D), lambda b: (b, 0, 0))

    return pl.pallas_call(
        _block_kernel,
        out_shape=jax.ShapeDtypeStruct((B, LQ, D), x.dtype),
        grid_spec=pltpu.PrefetchScalarGridSpec(
            num_scalar_prefetch=0,
            grid=(B,),
            in_specs=in_specs,
            out_specs=out_spec,
        ),
        compiler_params=pltpu.CompilerParams(
            dimension_semantics=("parallel",)),
    )(x, enc,
      prepped["norm_w"], prepped["w_slab"],
      prepped["ca_kvw_t"], prepped["mlp_w2_t"])


# ---------------- pure-JAX reference (for correctness check) ----------------
def _reference(x, enc, p):
    def rms(v, w):
        v = v.astype(jnp.float32)
        ms = jnp.mean(v * v, axis=-1, keepdims=True)
        return v * jax.lax.rsqrt(ms + EPS) * w

    def mha(q_in, k_in, v_in, qw, kw, vw, ow):
        q = q_in @ qw.T
        k = k_in @ kw.T
        v = v_in @ vw.T
        b, lq, _ = q.shape
        lk = k.shape[1]
        q = q.reshape(b, lq, NUM_HEADS, HEAD_DIM).transpose(0, 2, 1, 3)
        k = k.reshape(b, lk, NUM_HEADS, HEAD_DIM).transpose(0, 2, 1, 3)
        v = v.reshape(b, lk, NUM_HEADS, HEAD_DIM).transpose(0, 2, 1, 3)
        s = jnp.einsum('bhqd,bhkd->bhqk', q, k) / math.sqrt(HEAD_DIM)
        a = jax.nn.softmax(s, axis=-1)
        o = jnp.einsum('bhqk,bhkd->bhqd', a, v)
        o = o.transpose(0, 2, 1, 3).reshape(b, lq, D)
        return o @ ow.T

    x = x + mha(rms(x, p["n1w"]), enc, enc,
                p["ca_qw"], p["ca_kw"], p["ca_vw"], p["ca_ow"])
    n2 = rms(x, p["n2w"])
    x = x + mha(n2, n2, n2,
                p["sa_qw"], p["sa_kw"], p["sa_vw"], p["sa_ow"])
    n3 = rms(x, p["n3w"])
    h = n3 @ p["mlp_w1"].T
    h = h * jax.nn.sigmoid(h)
    x = x + h @ p["mlp_w2"].T
    return x


def _init_params(key):
    ks = jax.random.split(key, 12)
    scl = 0.1
    return {
        "n1w": jnp.ones((D,), jnp.float32),
        "n2w": jnp.ones((D,), jnp.float32),
        "n3w": jnp.ones((D,), jnp.float32),
        # cross-attn: separate q/k/v proj (kdim=vdim=cond_dim), no bias
        "ca_qw": scl * jax.random.normal(ks[0], (D, D), jnp.float32),
        "ca_kw": scl * jax.random.normal(ks[1], (D, C), jnp.float32),
        "ca_vw": scl * jax.random.normal(ks[2], (D, C), jnp.float32),
        "ca_ow": scl * jax.random.normal(ks[3], (D, D), jnp.float32),
        # self-attn: packed in_proj split into q/k/v, no bias
        "sa_qw": scl * jax.random.normal(ks[4], (D, D), jnp.float32),
        "sa_kw": scl * jax.random.normal(ks[5], (D, D), jnp.float32),
        "sa_vw": scl * jax.random.normal(ks[6], (D, D), jnp.float32),
        "sa_ow": scl * jax.random.normal(ks[7], (D, D), jnp.float32),
        # mlp
        "mlp_w1": scl * jax.random.normal(ks[8], (MLP_HIDDEN, D), jnp.float32),
        "mlp_w2": scl * jax.random.normal(ks[9], (D, MLP_HIDDEN), jnp.float32),
    }


if __name__ == "__main__":
    key = jax.random.PRNGKey(0)
    kx, kenc, kp = jax.random.split(key, 3)
    x = jax.random.normal(kx, (B, LQ, D), jnp.float32)
    enc = jax.random.normal(kenc, (B, LK, C), jnp.float32)
    params = _init_params(kp)
    prepped = prepare_params(params)

    out = cross_attention_block(x, enc, prepped)
    out = jax.block_until_ready(out)

    ref = _reference(x, enc, params)
    assert out.shape == (B, LQ, D)
    # Tolerance slightly wider than pure-f32 to account for the EUP approximate
    # reciprocal in the softmax; any real bug shows up as O(1e-1) or larger.
    max_err = jnp.max(jnp.abs(out - ref))
    assert jnp.allclose(out, ref, atol=5e-3, rtol=5e-3), f"max abs err = {max_err}"
    print("KERNEL_OK")
</pallas_src>

<mosaic_0001>
module attributes {stable_mosaic.version = 11 : i64} {
  func.func @_block_kernel(%arg0: i32, %arg1: memref<1x8x32xf32, #tpu.memory_space<vmem>>, %arg2: memref<1x8x16xf32, #tpu.memory_space<vmem>>, %arg3: memref<3x32xf32, #tpu.memory_space<vmem>>, %arg4: memref<32x640xf32, #tpu.memory_space<vmem>>, %arg5: memref<16x64xf32, #tpu.memory_space<vmem>>, %arg6: memref<128x32xf32, #tpu.memory_space<vmem>>, %arg7: memref<1x8x32xf32, #tpu.memory_space<vmem>>) attributes {dimension_semantics = [#tpu.dimension_semantics<parallel>], iteration_bounds = array<i64: 2>, scalar_prefetch = 0 : i64, scratch_operands = 0 : i64, tpu.core_type = #tpu.core_type<tc>, window_params = [{transform_indices = @transform_0, window_bounds = array<i64: 1, 8, 32>}, {transform_indices = @transform_1, window_bounds = array<i64: 1, 8, 16>}, {pipeline_mode = #tpu.pipeline_mode<synchronous>, transform_indices = @transform_2, window_bounds = array<i64: 3, 32>}, {pipeline_mode = #tpu.pipeline_mode<synchronous>, transform_indices = @transform_3, window_bounds = array<i64: 32, 640>}, {pipeline_mode = #tpu.pipeline_mode<synchronous>, transform_indices = @transform_4, window_bounds = array<i64: 16, 64>}, {pipeline_mode = #tpu.pipeline_mode<synchronous>, transform_indices = @transform_5, window_bounds = array<i64: 128, 32>}, {transform_indices = @transform_6, window_bounds = array<i64: 1, 8, 32>}]} {
    %c0 = arith.constant 0 : index
    %c0_0 = arith.constant 0 : index
    %c0_1 = arith.constant 0 : index
    %0 = vector.load %arg1[%c0, %c0_0, %c0_1] : memref<1x8x32xf32, #tpu.memory_space<vmem>>, vector<1x8x32xf32>
    %1 = vector.shape_cast %0 : vector<1x8x32xf32> to vector<8x32xf32>
    %c0_2 = arith.constant 0 : index
    %c0_3 = arith.constant 0 : index
    %c0_4 = arith.constant 0 : index
    %2 = vector.load %arg2[%c0_2, %c0_3, %c0_4] : memref<1x8x16xf32, #tpu.memory_space<vmem>>, vector<1x8x16xf32>
    %3 = vector.shape_cast %2 : vector<1x8x16xf32> to vector<8x16xf32>
    %c0_5 = arith.constant 0 : index
    %c0_6 = arith.constant 0 : index
    %4 = vector.load %arg3[%c0_5, %c0_6] : memref<3x32xf32, #tpu.memory_space<vmem>>, vector<3x32xf32>
    %5 = vector.extract_strided_slice %4 {offsets = [0, 0], sizes = [1, 32], strides = [1, 1]} : vector<3x32xf32> to vector<1x32xf32>
    %6 = arith.mulf %1, %1 : vector<8x32xf32>
    %cst = arith.constant dense<0.000000e+00> : vector<8xf32>
    %7 = vector.multi_reduction <add>, %6, %cst [1] : vector<8x32xf32> to vector<8xf32>
    %8 = vector.shape_cast %7 : vector<8xf32> to vector<8x1xf32>
    %cst_7 = arith.constant 3.200000e+01 : f32
    %9 = vector.broadcast %cst_7 : f32 to vector<8x1xf32>
    %10 = arith.divf %8, %9 : vector<8x1xf32>
    %cst_8 = arith.constant 9.99999997E-7 : f32
    %11 = vector.broadcast %cst_8 : f32 to vector<8x1xf32>
    %12 = arith.addf %10, %11 : vector<8x1xf32>
    %13 = math.rsqrt %12 : vector<8x1xf32>
    %14 = vector.broadcast %13 : vector<8x1xf32> to vector<8x32xf32>
    %15 = arith.mulf %1, %14 : vector<8x32xf32>
    %16 = vector.broadcast %5 : vector<1x32xf32> to vector<8x32xf32>
    %17 = arith.mulf %15, %16 : vector<8x32xf32>
    %c0_9 = arith.constant 0 : index
    %c0_10 = arith.constant 0 : index
    %18 = vector.load %arg4[%c0_9, %c0_10] : memref<32x640xf32, #tpu.memory_space<vmem>>, vector<32x32xf32>
    %cst_11 = arith.constant dense<0.000000e+00> : vector<8x32xf32>
    %19 = tpu.matmul %17, %18, %cst_11 {dimension_numbers = #tpu.dot_dimension_numbers<[1], [0], [0], [1], [0, 0, 1, 1], [], []>} : vector<8x32xf32>, vector<32x32xf32>, vector<8x32xf32> -> vector<8x32xf32>
    %c0_12 = arith.constant 0 : index
    %c0_13 = arith.constant 0 : index
    %20 = vector.load %arg5[%c0_12, %c0_13] : memref<16x64xf32, #tpu.memory_space<vmem>>, vector<16x64xf32>
    %cst_14 = arith.constant dense<0.000000e+00> : vector<8x64xf32>
    %21 = tpu.matmul %3, %20, %cst_14 {dimension_numbers = #tpu.dot_dimension_numbers<[1], [0], [0], [1], [0, 0, 1, 1], [], []>} : vector<8x16xf32>, vector<16x64xf32>, vector<8x64xf32> -> vector<8x64xf32>
    %22 = vector.extract_strided_slice %21 {offsets = [0, 0], sizes = [8, 32], strides = [1, 1]} : vector<8x64xf32> to vector<8x32xf32>
    %23 = vector.extract_strided_slice %21 {offsets = [0, 32], sizes = [8, 32], strides = [1, 1]} : vector<8x64xf32> to vector<8x32xf32>
    %c0_15 = arith.constant 0 : index
    %c128 = arith.constant 128 : index
    %24 = vector.load %arg4[%c0_15, %c128] : memref<32x640xf32, #tpu.memory_space<vmem>>, vector<32x32xf32>
    %25 = vector.extract_strided_slice %19 {offsets = [0, 0], sizes = [8, 8], strides = [1, 1]} : vector<8x32xf32> to vector<8x8xf32>
    %26 = vector.extract_strided_slice %19 {offsets = [0, 8], sizes = [8, 8], strides = [1, 1]} : vector<8x32xf32> to vector<8x8xf32>
    %27 = vector.extract_strided_slice %19 {offsets = [0, 16], sizes = [8, 8], strides = [1, 1]} : vector<8x32xf32> to vector<8x8xf32>
    %28 = vector.extract_strided_slice %19 {offsets = [0, 24], sizes = [8, 8], strides = [1, 1]} : vector<8x32xf32> to vector<8x8xf32>
    %29 = vector.shape_cast %25 : vector<8x8xf32> to vector<1x8x8xf32>
    %30 = vector.shape_cast %26 : vector<8x8xf32> to vector<1x8x8xf32>
    %31 = vector.shape_cast %27 : vector<8x8xf32> to vector<1x8x8xf32>
    %32 = vector.shape_cast %28 : vector<8x8xf32> to vector<1x8x8xf32>
    %33 = tpu.concatenate %29, %30, %31, %32 in 0 : vector<1x8x8xf32>, vector<1x8x8xf32>, vector<1x8x8xf32>, vector<1x8x8xf32> -> vector<4x8x8xf32>
    %34 = vector.extract_strided_slice %22 {offsets = [0, 0], sizes = [8, 8], strides = [1, 1]} : vector<8x32xf32> to vector<8x8xf32>
    %35 = vector.extract_strided_slice %22 {offsets = [0, 8], sizes = [8, 8], strides = [1, 1]} : vector<8x32xf32> to vector<8x8xf32>
    %36 = vector.extract_strided_slice %22 {offsets = [0, 16], sizes = [8, 8], strides = [1, 1]} : vector<8x32xf32> to vector<8x8xf32>
    %37 = vector.extract_strided_slice %22 {offsets = [0, 24], sizes = [8, 8], strides = [1, 1]} : vector<8x32xf32> to vector<8x8xf32>
    %38 = vector.shape_cast %34 : vector<8x8xf32> to vector<1x8x8xf32>
    %39 = vector.shape_cast %35 : vector<8x8xf32> to vector<1x8x8xf32>
    %40 = vector.shape_cast %36 : vector<8x8xf32> to vector<1x8x8xf32>
    %41 = vector.shape_cast %37 : vector<8x8xf32> to vector<1x8x8xf32>
    %42 = tpu.concatenate %38, %39, %40, %41 in 0 : vector<1x8x8xf32>, vector<1x8x8xf32>, vector<1x8x8xf32>, vector<1x8x8xf32> -> vector<4x8x8xf32>
    %43 = vector.extract_strided_slice %23 {offsets = [0, 0], sizes = [8, 8], strides = [1, 1]} : vector<8x32xf32> to vector<8x8xf32>
    %44 = vector.extract_strided_slice %23 {offsets = [0, 8], sizes = [8, 8], strides = [1, 1]} : vector<8x32xf32> to vector<8x8xf32>
    %45 = vector.extract_strided_slice %23 {offsets = [0, 16], sizes = [8, 8], strides = [1, 1]} : vector<8x32xf32> to vector<8x8xf32>
    %46 = vector.extract_strided_slice %23 {offsets = [0, 24], sizes = [8, 8], strides = [1, 1]} : vector<8x32xf32> to vector<8x8xf32>
    %47 = vector.shape_cast %43 : vector<8x8xf32> to vector<1x8x8xf32>
    %48 = vector.shape_cast %44 : vector<8x8xf32> to vector<1x8x8xf32>
    %49 = vector.shape_cast %45 : vector<8x8xf32> to vector<1x8x8xf32>
    %50 = vector.shape_cast %46 : vector<8x8xf32> to vector<1x8x8xf32>
    %51 = tpu.concatenate %47, %48, %49, %50 in 0 : vector<1x8x8xf32>, vector<1x8x8xf32>, vector<1x8x8xf32>, vector<1x8x8xf32> -> vector<4x8x8xf32>
    "tpu.trace_start"() <{level = 10 : i32, message = "hqd,hkd->hqk"}> : () -> ()
    %cst_16 = arith.constant dense<0.000000e+00> : vector<4x8x8xf32>
    %52 = tpu.matmul %33, %42, %cst_16 {dimension_numbers = #tpu.dot_dimension_numbers<[2], [2], [1], [1], [0, 0, 0, 1, 1, 1], [0], [0]>} : vector<4x8x8xf32>, vector<4x8x8xf32>, vector<4x8x8xf32> -> vector<4x8x8xf32>
    "tpu.trace_stop"() : () -> ()
    %cst_17 = arith.constant dense<0xFF800000> : vector<4x8xf32>
    %53 = vector.multi_reduction <maximumf>, %52, %cst_17 [2] : vector<4x8x8xf32> to vector<4x8xf32>
    %54 = vector.shape_cast %53 : vector<4x8xf32> to vector<4x8x1xf32>
    %55 = vector.broadcast %54 : vector<4x8x1xf32> to vector<4x8x8xf32>
    %56 = arith.subf %52, %55 : vector<4x8x8xf32>
    %57 = math.exp %56 : vector<4x8x8xf32>
    %cst_18 = arith.constant dense<0.000000e+00> : vector<4x8xf32>
    %58 = vector.multi_reduction <add>, %57, %cst_18 [2] : vector<4x8x8xf32> to vector<4x8xf32>
    %59 = vector.shape_cast %58 : vector<4x8xf32> to vector<4x8x1xf32>
    %60 = tpu.reciprocal %59 {approx = true} : vector<4x8x1xf32> -> vector<4x8x1xf32>
    %61 = vector.broadcast %60 : vector<4x8x1xf32> to vector<4x8x8xf32>
    %62 = arith.mulf %57, %61 : vector<4x8x8xf32>
    "tpu.trace_start"() <{level = 10 : i32, message = "hqk,hkd->hqd"}> : () -> ()
    %cst_19 = arith.constant dense<0.000000e+00> : vector<4x8x8xf32>
    %63 = tpu.matmul %62, %51, %cst_19 {dimension_numbers = #tpu.dot_dimension_numbers<[2], [1], [1], [2], [0, 0, 0, 1, 1, 2], [0], [0]>} : vector<4x8x8xf32>, vector<4x8x8xf32>, vector<4x8x8xf32> -> vector<4x8x8xf32>
    "tpu.trace_stop"() : () -> ()
    %64 = vector.extract_strided_slice %63 {offsets = [0, 0, 0], sizes = [1, 8, 8], strides = [1, 1, 1]} : vector<4x8x8xf32> to vector<1x8x8xf32>
    %65 = vector.shape_cast %64 : vector<1x8x8xf32> to vector<8x8xf32>
    %66 = vector.extract_strided_slice %63 {offsets = [1, 0, 0], sizes = [1, 8, 8], strides = [1, 1, 1]} : vector<4x8x8xf32> to vector<1x8x8xf32>
    %67 = vector.shape_cast %66 : vector<1x8x8xf32> to vector<8x8xf32>
    %68 = vector.extract_strided_slice %63 {offsets = [2, 0, 0], sizes = [1, 8, 8], strides = [1, 1, 1]} : vector<4x8x8xf32> to vector<1x8x8xf32>
    %69 = vector.shape_cast %68 : vector<1x8x8xf32> to vector<8x8xf32>
    %70 = vector.extract_strided_slice %63 {offsets = [3, 0, 0], sizes = [1, 8, 8], strides = [1, 1, 1]} : vector<4x8x8xf32> to vector<1x8x8xf32>
    %71 = vector.shape_cast %70 : vector<1x8x8xf32> to vector<8x8xf32>
    %72 = tpu.concatenate %65, %67, %69, %71 in 1 : vector<8x8xf32>, vector<8x8xf32>, vector<8x8xf32>, vector<8x8xf32> -> vector<8x32xf32>
    %cst_20 = arith.constant dense<0.000000e+00> : vector<8x32xf32>
    %73 = tpu.matmul %72, %24, %cst_20 {dimension_numbers = #tpu.dot_dimension_numbers<[1], [0], [0], [1], [0, 0, 1, 1], [], []>} : vector<8x32xf32>, vector<32x32xf32>, vector<8x32xf32> -> vector<8x32xf32>
    %74 = arith.addf %1, %73 : vector<8x32xf32>
    %75 = vector.extract_strided_slice %4 {offsets = [1, 0], sizes = [1, 32], strides = [1, 1]} : vector<3x32xf32> to vector<1x32xf32>
    %76 = arith.mulf %74, %74 : vector<8x32xf32>
    %cst_21 = arith.constant dense<0.000000e+00> : vector<8xf32>
    %77 = vector.multi_reduction <add>, %76, %cst_21 [1] : vector<8x32xf32> to vector<8xf32>
    %78 = vector.shape_cast %77 : vector<8xf32> to vector<8x1xf32>
    %cst_22 = arith.constant 3.200000e+01 : f32
    %79 = vector.broadcast %cst_22 : f32 to vector<8x1xf32>
    %80 = arith.divf %78, %79 : vector<8x1xf32>
    %cst_23 = arith.constant 9.99999997E-7 : f32
    %81 = vector.broadcast %cst_23 : f32 to vector<8x1xf32>
    %82 = arith.addf %80, %81 : vector<8x1xf32>
    %83 = math.rsqrt %82 : vector<8x1xf32>
    %84 = vector.broadcast %83 : vector<8x1xf32> to vector<8x32xf32>
    %85 = arith.mulf %74, %84 : vector<8x32xf32>
    %86 = vector.broadcast %75 : vector<1x32xf32> to vector<8x32xf32>
    %87 = arith.mulf %85, %86 : vector<8x32xf32>
    %c0_24 = arith.constant 0 : index
    %c256 = arith.constant 256 : index
    %88 = vector.load %arg4[%c0_24, %c256] : memref<32x640xf32, #tpu.memory_space<vmem>>, vector<32x96xf32>
    %cst_25 = arith.constant dense<0.000000e+00> : vector<8x96xf32>
    %89 = tpu.matmul %87, %88, %cst_25 {dimension_numbers = #tpu.dot_dimension_numbers<[1], [0], [0], [1], [0, 0, 1, 1], [], []>} : vector<8x32xf32>, vector<32x96xf32>, vector<8x96xf32> -> vector<8x96xf32>
    %90 = vector.extract_strided_slice %89 {offsets = [0, 0], sizes = [8, 32], strides = [1, 1]} : vector<8x96xf32> to vector<8x32xf32>
    %91 = vector.extract_strided_slice %89 {offsets = [0, 32], sizes = [8, 32], strides = [1, 1]} : vector<8x96xf32> to vector<8x32xf32>
    %92 = vector.extract_strided_slice %89 {offsets = [0, 64], sizes = [8, 32], strides = [1, 1]} : vector<8x96xf32> to vector<8x32xf32>
    %c0_26 = arith.constant 0 : index
    %c384 = arith.constant 384 : index
    %93 = vector.load %arg4[%c0_26, %c384] : memref<32x640xf32, #tpu.memory_space<vmem>>, vector<32x32xf32>
    %94 = vector.extract_strided_slice %90 {offsets = [0, 0], sizes = [8, 8], strides = [1, 1]} : vector<8x32xf32> to vector<8x8xf32>
    %95 = vector.extract_strided_slice %90 {offsets = [0, 8], sizes = [8, 8], strides = [1, 1]} : vector<8x32xf32> to vector<8x8xf32>
    %96 = vector.extract_strided_slice %90 {offsets = [0, 16], sizes = [8, 8], strides = [1, 1]} : vector<8x32xf32> to vector<8x8xf32>
    %97 = vector.extract_strided_slice %90 {offsets = [0, 24], sizes = [8, 8], strides = [1, 1]} : vector<8x32xf32> to vector<8x8xf32>
    %98 = vector.shape_cast %94 : vector<8x8xf32> to vector<1x8x8xf32>
    %99 = vector.shape_cast %95 : vector<8x8xf32> to vector<1x8x8xf32>
    %100 = vector.shape_cast %96 : vector<8x8xf32> to vector<1x8x8xf32>
    %101 = vector.shape_cast %97 : vector<8x8xf32> to vector<1x8x8xf32>
    %102 = tpu.concatenate %98, %99, %100, %101 in 0 : vector<1x8x8xf32>, vector<1x8x8xf32>, vector<1x8x8xf32>, vector<1x8x8xf32> -> vector<4x8x8xf32>
    %103 = vector.extract_strided_slice %91 {offsets = [0, 0], sizes = [8, 8], strides = [1, 1]} : vector<8x32xf32> to vector<8x8xf32>
    %104 = vector.extract_strided_slice %91 {offsets = [0, 8], sizes = [8, 8], strides = [1, 1]} : vector<8x32xf32> to vector<8x8xf32>
    %105 = vector.extract_strided_slice %91 {offsets = [0, 16], sizes = [8, 8], strides = [1, 1]} : vector<8x32xf32> to vector<8x8xf32>
    %106 = vector.extract_strided_slice %91 {offsets = [0, 24], sizes = [8, 8], strides = [1, 1]} : vector<8x32xf32> to vector<8x8xf32>
    %107 = vector.shape_cast %103 : vector<8x8xf32> to vector<1x8x8xf32>
    %108 = vector.shape_cast %104 : vector<8x8xf32> to vector<1x8x8xf32>
    %109 = vector.shape_cast %105 : vector<8x8xf32> to vector<1x8x8xf32>
    %110 = vector.shape_cast %106 : vector<8x8xf32> to vector<1x8x8xf32>
    %111 = tpu.concatenate %107, %108, %109, %110 in 0 : vector<1x8x8xf32>, vector<1x8x8xf32>, vector<1x8x8xf32>, vector<1x8x8xf32> -> vector<4x8x8xf32>
    %112 = vector.extract_strided_slice %92 {offsets = [0, 0], sizes = [8, 8], strides = [1, 1]} : vector<8x32xf32> to vector<8x8xf32>
    %113 = vector.extract_strided_slice %92 {offsets = [0, 8], sizes = [8, 8], strides = [1, 1]} : vector<8x32xf32> to vector<8x8xf32>
    %114 = vector.extract_strided_slice %92 {offsets = [0, 16], sizes = [8, 8], strides = [1, 1]} : vector<8x32xf32> to vector<8x8xf32>
    %115 = vector.extract_strided_slice %92 {offsets = [0, 24], sizes = [8, 8], strides = [1, 1]} : vector<8x32xf32> to vector<8x8xf32>
    %116 = vector.shape_cast %112 : vector<8x8xf32> to vector<1x8x8xf32>
    %117 = vector.shape_cast %113 : vector<8x8xf32> to vector<1x8x8xf32>
    %118 = vector.shape_cast %114 : vector<8x8xf32> to vector<1x8x8xf32>
    %119 = vector.shape_cast %115 : vector<8x8xf32> to vector<1x8x8xf32>
    %120 = tpu.concatenate %116, %117, %118, %119 in 0 : vector<1x8x8xf32>, vector<1x8x8xf32>, vector<1x8x8xf32>, vector<1x8x8xf32> -> vector<4x8x8xf32>
    "tpu.trace_start"() <{level = 10 : i32, message = "hqd,hkd->hqk"}> : () -> ()
    %cst_27 = arith.constant dense<0.000000e+00> : vector<4x8x8xf32>
    %121 = tpu.matmul %102, %111, %cst_27 {dimension_numbers = #tpu.dot_dimension_numbers<[2], [2], [1], [1], [0, 0, 0, 1, 1, 1], [0], [0]>} : vector<4x8x8xf32>, vector<4x8x8xf32>, vector<4x8x8xf32> -> vector<4x8x8xf32>
    "tpu.trace_stop"() : () -> ()
    %cst_28 = arith.constant dense<0xFF800000> : vector<4x8xf32>
    %122 = vector.multi_reduction <maximumf>, %121, %cst_28 [2] : vector<4x8x8xf32> to vector<4x8xf32>
    %123 = vector.shape_cast %122 : vector<4x8xf32> to vector<4x8x1xf32>
    %124 = vector.broadcast %123 : vector<4x8x1xf32> to vector<4x8x8xf32>
    %125 = arith.subf %121, %124 : vector<4x8x8xf32>
    %126 = math.exp %125 : vector<4x8x8xf32>
    %cst_29 = arith.constant dense<0.000000e+00> : vector<4x8xf32>
    %127 = vector.multi_reduction <add>, %126, %cst_29 [2] : vector<4x8x8xf32> to vector<4x8xf32>
    %128 = vector.shape_cast %127 : vector<4x8xf32> to vector<4x8x1xf32>
    %129 = tpu.reciprocal %128 {approx = true} : vector<4x8x1xf32> -> vector<4x8x1xf32>
    %130 = vector.broadcast %129 : vector<4x8x1xf32> to vector<4x8x8xf32>
    %131 = arith.mulf %126, %130 : vector<4x8x8xf32>
    "tpu.trace_start"() <{level = 10 : i32, message = "hqk,hkd->hqd"}> : () -> ()
    %cst_30 = arith.constant dense<0.000000e+00> : vector<4x8x8xf32>
    %132 = tpu.matmul %131, %120, %cst_30 {dimension_numbers = #tpu.dot_dimension_numbers<[2], [1], [1], [2], [0, 0, 0, 1, 1, 2], [0], [0]>} : vector<4x8x8xf32>, vector<4x8x8xf32>, vector<4x8x8xf32> -> vector<4x8x8xf32>
    "tpu.trace_stop"() : () -> ()
    %133 = vector.extract_strided_slice %132 {offsets = [0, 0, 0], sizes = [1, 8, 8], strides = [1, 1, 1]} : vector<4x8x8xf32> to vector<1x8x8xf32>
    %134 = vector.shape_cast %133 : vector<1x8x8xf32> to vector<8x8xf32>
    %135 = vector.extract_strided_slice %132 {offsets = [1, 0, 0], sizes = [1, 8, 8], strides = [1, 1, 1]} : vector<4x8x8xf32> to vector<1x8x8xf32>
    %136 = vector.shape_cast %135 : vector<1x8x8xf32> to vector<8x8xf32>
    %137 = vector.extract_strided_slice %132 {offsets = [2, 0, 0], sizes = [1, 8, 8], strides = [1, 1, 1]} : vector<4x8x8xf32> to vector<1x8x8xf32>
    %138 = vector.shape_cast %137 : vector<1x8x8xf32> to vector<8x8xf32>
    %139 = vector.extract_strided_slice %132 {offsets = [3, 0, 0], sizes = [1, 8, 8], strides = [1, 1, 1]} : vector<4x8x8xf32> to vector<1x8x8xf32>
    %140 = vector.shape_cast %139 : vector<1x8x8xf32> to vector<8x8xf32>
    %141 = tpu.concatenate %134, %136, %138, %140 in 1 : vector<8x8xf32>, vector<8x8xf32>, vector<8x8xf32>, vector<8x8xf32> -> vector<8x32xf32>
    %cst_31 = arith.constant dense<0.000000e+00> : vector<8x32xf32>
    %142 = tpu.matmul %141, %93, %cst_31 {dimension_numbers = #tpu.dot_dimension_numbers<[1], [0], [0], [1], [0, 0, 1, 1], [], []>} : vector<8x32xf32>, vector<32x32xf32>, vector<8x32xf32> -> vector<8x32xf32>
    %143 = arith.addf %74, %142 : vector<8x32xf32>
    %144 = vector.extract_strided_slice %4 {offsets = [2, 0], sizes = [1, 32], strides = [1, 1]} : vector<3x32xf32> to vector<1x32xf32>
    %145 = arith.mulf %143, %143 : vector<8x32xf32>
    %cst_32 = arith.constant dense<0.000000e+00> : vector<8xf32>
    %146 = vector.multi_reduction <add>, %145, %cst_32 [1] : vector<8x32xf32> to vector<8xf32>
    %147 = vector.shape_cast %146 : vector<8xf32> to vector<8x1xf32>
    %cst_33 = arith.constant 3.200000e+01 : f32
    %148 = vector.broadcast %cst_33 : f32 to vector<8x1xf32>
    %149 = arith.divf %147, %148 : vector<8x1xf32>
    %cst_34 = arith.constant 9.99999997E-7 : f32
    %150 = vector.broadcast %cst_34 : f32 to vector<8x1xf32>
    %151 = arith.addf %149, %150 : vector<8x1xf32>
    %152 = math.rsqrt %151 : vector<8x1xf32>
    %153 = vector.broadcast %152 : vector<8x1xf32> to vector<8x32xf32>
    %154 = arith.mulf %143, %153 : vector<8x32xf32>
    %155 = vector.broadcast %144 : vector<1x32xf32> to vector<8x32xf32>
    %156 = arith.mulf %154, %155 : vector<8x32xf32>
    %c0_35 = arith.constant 0 : index
    %c512 = arith.constant 512 : index
    %157 = vector.load %arg4[%c0_35, %c512] : memref<32x640xf32, #tpu.memory_space<vmem>>, vector<32x128xf32>
    %cst_36 = arith.constant dense<0.000000e+00> : vector<8x128xf32>
    %158 = tpu.matmul %156, %157, %cst_36 {dimension_numbers = #tpu.dot_dimension_numbers<[1], [0], [0], [1], [0, 0, 1, 1], [], []>} : vector<8x32xf32>, vector<32x128xf32>, vector<8x128xf32> -> vector<8x128xf32>
    %159 = arith.negf %158 : vector<8x128xf32>
    %160 = math.exp %159 : vector<8x128xf32>
    %cst_37 = arith.constant 1.000000e+00 : f32
    %161 = vector.broadcast %cst_37 : f32 to vector<8x128xf32>
    %162 = arith.addf %161, %160 : vector<8x128xf32>
    %163 = arith.divf %161, %162 : vector<8x128xf32>
    %164 = arith.mulf %158, %163 : vector<8x128xf32>
    %c0_38 = arith.constant 0 : index
    %c0_39 = arith.constant 0 : index
    %165 = vector.load %arg6[%c0_38, %c0_39] : memref<128x32xf32, #tpu.memory_space<vmem>>, vector<128x32xf32>
    %cst_40 = arith.constant dense<0.000000e+00> : vector<8x32xf32>
    %166 = tpu.matmul %164, %165, %cst_40 {dimension_numbers = #tpu.dot_dimension_numbers<[1], [0], [0], [1], [0, 0, 1, 1], [], []>} : vector<8x128xf32>, vector<128x32xf32>, vector<8x32xf32> -> vector<8x32xf32>
    %167 = arith.addf %143, %166 : vector<8x32xf32>
    %c0_41 = arith.constant 0 : index
    %c0_42 = arith.constant 0 : index
    %c0_43 = arith.constant 0 : index
    %168 = vector.load %arg7[%c0_41, %c0_42, %c0_43] : memref<1x8x32xf32, #tpu.memory_space<vmem>>, vector<1x8x32xf32>
    %169 = vector.shape_cast %168 : vector<1x8x32xf32> to vector<8x32xf32>
    %170 = vector.shape_cast %167 : vector<8x32xf32> to vector<1x8x32xf32>
    tpu.vector_store %arg7[%c0_41, %c0_42, %c0_43], %170 {strides = array<i32>} : memref<1x8x32xf32, #tpu.memory_space<vmem>>, vector<1x8x32xf32>,
    return
  }
  func.func @transform_0(%arg0: i32) -> (i32, i32, i32) {
    %c0_i32 = arith.constant 0 : i32
    %c0_i32_0 = arith.constant 0 : i32
    %c0_i32_1 = arith.constant 0 : i32
    return %arg0, %c0_i32, %c0_i32_0 : i32, i32, i32
  }
  func.func @transform_1(%arg0: i32) -> (i32, i32, i32) {
    %c0_i32 = arith.constant 0 : i32
    %c0_i32_0 = arith.constant 0 : i32
    %c0_i32_1 = arith.constant 0 : i32
    return %arg0, %c0_i32, %c0_i32_0 : i32, i32, i32
  }
  func.func @transform_2(%arg0: i32) -> (i32, i32) {
    %c0_i32 = arith.constant 0 : i32
    %c0_i32_0 = arith.constant 0 : i32
    %c0_i32_1 = arith.constant 0 : i32
    return %c0_i32, %c0_i32_0 : i32, i32
  }
  func.func @transform_3(%arg0: i32) -> (i32, i32) {
    %c0_i32 = arith.constant 0 : i32
    %c0_i32_0 = arith.constant 0 : i32
    %c0_i32_1 = arith.constant 0 : i32
    return %c0_i32, %c0_i32_0 : i32, i32
  }
  func.func @transform_4(%arg0: i32) -> (i32, i32) {
    %c0_i32 = arith.constant 0 : i32
    %c0_i32_0 = arith.constant 0 : i32
    %c0_i32_1 = arith.constant 0 : i32
    return %c0_i32, %c0_i32_0 : i32, i32
  }
  func.func @transform_5(%arg0: i32) -> (i32, i32) {
    %c0_i32 = arith.constant 0 : i32
    %c0_i32_0 = arith.constant 0 : i32
    %c0_i32_1 = arith.constant 0 : i32
    return %c0_i32, %c0_i32_0 : i32, i32
  }
  func.func @transform_6(%arg0: i32) -> (i32, i32, i32) {
    %c0_i32 = arith.constant 0 : i32
    %c0_i32_0 = arith.constant 0 : i32
    %c0_i32_1 = arith.constant 0 : i32
    return %arg0, %c0_i32, %c0_i32_0 : i32, i32, i32
  }
}

</mosaic_0001>

<llo_original>
// kernel: tpu_custom_call.1
$region0: #{tpu_custom_call.1}
  #allocation0 [shape = 'u32[]', space=smem, size = 0x4, offset = 0x4, fixed_abs, tag = 'smem constant byte address 0x4 - core index']
  #allocation1 [shape = 'u32[144,128]{1,0:T(1,128)}', space=vmem, size = 0x12000, scoped, tag = 'internal scratch']
  %s0 = inlined_call_operand.hbm [shape: f32[2,8,32], index: 0, kind: input, shape index: {}]
  %s1 = inlined_call_operand.hbm [shape: f32[2,8,16], index: 1, kind: input, shape index: {}]
  %s2 = inlined_call_operand.vmem [shape: f32[3,32], index: 2, kind: input, shape index: {}]
  %s3 = inlined_call_operand.vmem [shape: f32[32,640], index: 3, kind: input, shape index: {}]
  %s4 = inlined_call_operand.hbm [shape: f32[16,64], index: 4, kind: input, shape index: {}]
  %s5 = inlined_call_operand.vmem [shape: f32[128,32], index: 5, kind: input, shape index: {}]
  %s6 = inlined_call_operand.hbm [shape: f32[2,8,32], index: 6, kind: output, shape index: {}]
  %s7 = sld [smem:[#allocation0]]
  $region69: #{tpu_custom_call.1} parent=0
    _
  %s9 = ssub.s32 1, %s7
  %s10 = scalar_select 0, %s9, %s7
  $region1: #{tpu_custom_call.1} parent=0
    #allocation2 [shape = 'u8[8192]{0}', space=vmem, size = 0x2000, scoped, tag = 'input window, operand 0']
    #allocation3 [shape = 's32[2]{0}', space=sflag, size = 0x8, scoped, tag = 'scoped memory for tpu_custom_call.1']
    #allocation4 [shape = 's32[2]{0}', space=sflag, size = 0x8, scoped, tag = 'scoped memory for tpu_custom_call.1']
    #allocation5 [shape = 'u8[8192]{0}', space=vmem, size = 0x2000, scoped, tag = 'input window, operand 1']
    #allocation6 [shape = 's32[2]{0}', space=sflag, size = 0x8, scoped, tag = 'scoped memory for tpu_custom_call.1']
    #allocation7 [shape = 'u8[8192]{0}', space=vmem, size = 0x2000, scoped, tag = 'input window, operand 4, single buffered']
    #allocation8 [shape = 'u8[8192]{0}', space=vmem, size = 0x2000, scoped, tag = 'output window, operand 0']
    %11 = vsyncpa [#allocation3], 0
    %s12 = scalar_lea.sflag [#allocation3], 1
    %13 = vsyncpa %s12, 0
    %14 = vsyncpa [#allocation6], 0
    %s15 = scalar_lea.sflag [#allocation6], 1
    %16 = vsyncpa %s15, 0
    %17 = vsyncpa [#allocation4], 0
    %s18 = scalar_lea.sflag [#allocation4], 1
    %19 = vsyncpa %s18, 0
    loop: start=0, step=1, limit=4
    $region2: #{tpu_custom_call.1} parent=1 // loop_pre_header
      _
    $region3: #{tpu_custom_call.1} parent=1 // loop_header
      %s21 = sphi 0, %s25
      %p22 = scmp.ge.s32.totalorder %s21, 4
      %s31 = sphi 0, %s33
      %s34 = sphi 0, %s31
      %s35 = sphi 0, %s34
      %s51 = sphi 0, %s35
      %s57 = sphi 0, %s59
      %s60 = sphi 0, %s57
      %s61 = sphi 0, %s60
      %s77 = sphi 0, %s61
      %s81 = sphi 0, %s81
      %s83 = sphi 0, %s81
      %s84 = sphi 0, %s83
      %s98 = sphi 0, %s84
      %s102 = sphi 0, %s102
      %s104 = sphi 0, %s102
      %s105 = sphi 0, %s104
      %s119 = sphi 0, %s105
      %s123 = sphi 0, %s123
      %s125 = sphi 0, %s123
      %s126 = sphi 0, %s125
      %s140 = sphi 0, %s126
      %s144 = sphi 0, %s144
      %s146 = sphi 0, %s144
      %s147 = sphi 0, %s146
      %s161 = sphi 0, %s147
      %s167 = sphi 0, %s169
      %s170 = sphi 0, %s167
      %s171 = sphi 0, %s170
      %s187 = sphi 0, %s171
    $region4: #{tpu_custom_call.1} parent=1 // loop_header_branch
      %24 = sbr.rel (%p22) target = $region8
    $region5: #{tpu_custom_call.1} parent=1 // loop_body
      %s26 = ssub.s32 %s21, 1
      %s27 = ssub.s32 %s21, 2
      %s28 = sadd.s32 %s21, 1
      %s29 = ssub.s32 %s21, %s28
      %p30 = scmp.eq.s32.totalorder %s29, 0
      %s32 = sadd.s32 %s31, 1
      %s33 = scalar_select %p30, %s31, %s32
      %p36 = pneg %p30
      %p37 = scmp.eq.s32.totalorder %s21, 1
      %p38 = por %p36, %p37
      %p39 = scmp.ne.s32.totalorder %s31, %s34
      %p40 = scmp.eq.s32.totalorder %s21, 0
      %p41 = por %p39, %p40
      %p42 = scmp.ne.s32.totalorder %s31, %s34
      %p43 = scmp.eq.s32.totalorder %s26, 1
      %p44 = por %p42, %p43
      %p45 = scmp.ne.s32.totalorder %s34, %s35
      %p46 = scmp.eq.s32.totalorder %s26, 0
      %p47 = por %p45, %p46
      %p48 = scmp.ne.s32.totalorder %s34, %s35
      %p49 = scmp.eq.s32.totalorder %s27, 1
      %p50 = por %p48, %p49
      %p52 = scmp.ne.s32.totalorder %s35, %s51
      %p53 = scmp.eq.s32.totalorder %s27, 0
      %p54 = por %p52, %p53
      %s55 = ssub.s32 %s21, %s28
      %p56 = scmp.eq.s32.totalorder %s55, 0
      %s58 = sadd.s32 %s57, 1
      %s59 = scalar_select %p56, %s57, %s58
      %p62 = pneg %p56
      %p63 = scmp.eq.s32.totalorder %s21, 1
      %p64 = por %p62, %p63
      %p65 = scmp.ne.s32.totalorder %s57, %s60
      %p66 = scmp.eq.s32.totalorder %s21, 0
      %p67 = por %p65, %p66
      %p68 = scmp.ne.s32.totalorder %s57, %s60
      %p69 = scmp.eq.s32.totalorder %s26, 1
      %p70 = por %p68, %p69
      %p71 = scmp.ne.s32.totalorder %s60, %s61
      %p72 = scmp.eq.s32.totalorder %s26, 0
      %p73 = por %p71, %p72
      %p74 = scmp.ne.s32.totalorder %s60, %s61
      %p75 = scmp.eq.s32.totalorder %s27, 1
      %p76 = por %p74, %p75
      %p78 = scmp.ne.s32.totalorder %s61, %s77
      %p79 = scmp.eq.s32.totalorder %s27, 0
      %p80 = por %p78, %p79
      %s82 = sadd.s32 %s81, 1
      %p85 = scmp.eq.s32.totalorder %s21, 1
      %p86 = scmp.ne.s32.totalorder %s81, %s83
      %p87 = scmp.eq.s32.totalorder %s21, 0
      %p88 = por %p86, %p87
      %p89 = scmp.ne.s32.totalorder %s81, %s83
      %p90 = scmp.eq.s32.totalorder %s26, 1
      %p91 = por %p89, %p90
      %p92 = scmp.ne.s32.totalorder %s83, %s84
      %p93 = scmp.eq.s32.totalorder %s26, 0
      %p94 = por %p92, %p93
      %p95 = scmp.ne.s32.totalorder %s83, %s84
      %p96 = scmp.eq.s32.totalorder %s27, 1
      %p97 = por %p95, %p96
      %p99 = scmp.ne.s32.totalorder %s84, %s98
      %p100 = scmp.eq.s32.totalorder %s27, 0
      %p101 = por %p99, %p100
      %s103 = sadd.s32 %s102, 1
      %p106 = scmp.eq.s32.totalorder %s21, 1
      %p107 = scmp.ne.s32.totalorder %s102, %s104
      %p108 = scmp.eq.s32.totalorder %s21, 0
      %p109 = por %p107, %p108
      %p110 = scmp.ne.s32.totalorder %s102, %s104
      %p111 = scmp.eq.s32.totalorder %s26, 1
      %p112 = por %p110, %p111
      %p113 = scmp.ne.s32.totalorder %s104, %s105
      %p114 = scmp.eq.s32.totalorder %s26, 0
      %p115 = por %p113, %p114
      %p116 = scmp.ne.s32.totalorder %s104, %s105
      %p117 = scmp.eq.s32.totalorder %s27, 1
      %p118 = por %p116, %p117
      %p120 = scmp.ne.s32.totalorder %s105, %s119
      %p121 = scmp.eq.s32.totalorder %s27, 0
      %p122 = por %p120, %p121
      %s124 = sadd.s32 %s123, 1
      %p127 = scmp.eq.s32.totalorder %s21, 1
      %p128 = scmp.ne.s32.totalorder %s123, %s125
      %p129 = scmp.eq.s32.totalorder %s21, 0
      %p130 = por %p128, %p129
      %p131 = scmp.ne.s32.totalorder %s123, %s125
      %p132 = scmp.eq.s32.totalorder %s26, 1
      %p133 = por %p131, %p132
      %p134 = scmp.ne.s32.totalorder %s125, %s126
      %p135 = scmp.eq.s32.totalorder %s26, 0
      %p136 = por %p134, %p135
      %p137 = scmp.ne.s32.totalorder %s125, %s126
      %p138 = scmp.eq.s32.totalorder %s27, 1
      %p139 = por %p137, %p138
      %p141 = scmp.ne.s32.totalorder %s126, %s140
      %p142 = scmp.eq.s32.totalorder %s27, 0
      %p143 = por %p141, %p142
      %s145 = sadd.s32 %s144, 1
      %p148 = scmp.eq.s32.totalorder %s21, 1
      %p149 = scmp.ne.s32.totalorder %s144, %s146
      %p150 = scmp.eq.s32.totalorder %s21, 0
      %p151 = por %p149, %p150
      %p152 = scmp.ne.s32.totalorder %s144, %s146
      %p153 = scmp.eq.s32.totalorder %s26, 1
      %p154 = por %p152, %p153
      %p155 = scmp.ne.s32.totalorder %s146, %s147
      %p156 = scmp.eq.s32.totalorder %s26, 0
      %p157 = por %p155, %p156
      %p158 = scmp.ne.s32.totalorder %s146, %s147
      %p159 = scmp.eq.s32.totalorder %s27, 1
      %p160 = por %p158, %p159
      %p162 = scmp.ne.s32.totalorder %s147, %s161
      %p163 = scmp.eq.s32.totalorder %s27, 0
      %p164 = por %p162, %p163
      %s165 = ssub.s32 %s21, %s28
      %p166 = scmp.eq.s32.totalorder %s165, 0
      %s168 = sadd.s32 %s167, 1
      %s169 = scalar_select %p166, %s167, %s168
      %p172 = pneg %p166
      %p173 = scmp.eq.s32.totalorder %s21, 1
      %p174 = por %p172, %p173
      %p175 = scmp.ne.s32.totalorder %s167, %s170
      %p176 = scmp.eq.s32.totalorder %s21, 0
      %p177 = por %p175, %p176
      %p178 = scmp.ne.s32.totalorder %s167, %s170
      %p179 = scmp.eq.s32.totalorder %s26, 1
      %p180 = por %p178, %p179
      %p181 = scmp.ne.s32.totalorder %s170, %s171
      %p182 = scmp.eq.s32.totalorder %s26, 0
      %p183 = por %p181, %p182
      %p184 = scmp.ne.s32.totalorder %s170, %s171
      %p185 = scmp.eq.s32.totalorder %s27, 1
      %p186 = por %p184, %p185
      %p188 = scmp.ne.s32.totalorder %s171, %s187
      %p189 = scmp.eq.s32.totalorder %s27, 0
      %p190 = por %p188, %p189
      %p191 = scmp.le.s32.totalorder 1, %s21
      %p192 = scmp.lt.s32.totalorder %s21, 3
      %p193 = pnand %p191, %p192
      %p194 = pneg %p193
      // Predicated region
      $region9: #{tpu_custom_call.1} parent=5 // pred_check
        _
      $region10: #{tpu_custom_call.1} parent=5 // pred_check_branch
        %196 = sbr.rel (%p193) target = $region12
      $region11: #{tpu_custom_call.1} parent=5 // pred_region
        %s197 = ssub.s32 %s21, 1
        // Predicated region
        $region13: #{tpu_custom_call.1} parent=11 // pred_check
          %p198 = pneg %p94
        $region14: #{tpu_custom_call.1} parent=11 // pred_check_branch
          %200 = sbr.rel (%p198) target = $region16
        $region15: #{tpu_custom_call.1} parent=11 // pred_region
          _
        $region16: #{tpu_custom_call.1} parent=11 // pred_fallthru
          _
        // Predicated region
        $region17: #{tpu_custom_call.1} parent=11 // pred_check
          %p201 = pneg %p115
        $region18: #{tpu_custom_call.1} parent=11 // pred_check_branch
          %203 = sbr.rel (%p201) target = $region20
        $region19: #{tpu_custom_call.1} parent=11 // pred_region
          _
        $region20: #{tpu_custom_call.1} parent=11 // pred_fallthru
          _
        // Predicated region
        $region21: #{tpu_custom_call.1} parent=11 // pred_check
          %p204 = pneg %p136
        $region22: #{tpu_custom_call.1} parent=11 // pred_check_branch
          %206 = sbr.rel (%p204) target = $region24
        $region23: #{tpu_custom_call.1} parent=11 // pred_region
          %s208 = ssub.s32 256, 256
          %209 = vsyncadd [#allocation6], %s208
          %s210 = sshll.u32 [#allocation7], 4
          %s211 = int_to_ptr.vmem [resolvable:$true] %s210
          %216 = dma.hbm_to_vmem [thread:$0]  %s4, 256, %s211, [#allocation6], 128, 128, 8
        $region24: #{tpu_custom_call.1} parent=11 // pred_fallthru
          _
        // Predicated region
        $region25: #{tpu_custom_call.1} parent=11 // pred_check
          %p217 = pneg %p157
        $region26: #{tpu_custom_call.1} parent=11 // pred_check_branch
          %219 = sbr.rel (%p217) target = $region28
        $region27: #{tpu_custom_call.1} parent=11 // pred_region
          _
        $region28: #{tpu_custom_call.1} parent=11 // pred_fallthru
          _
      $region12: #{tpu_custom_call.1} parent=5 // pred_fallthru
        _
      %p220 = scmp.lt.s32.totalorder %s21, 2
      // Predicated region
      $region29: #{tpu_custom_call.1} parent=5 // pred_check
        %p221 = pneg %p220
      $region30: #{tpu_custom_call.1} parent=5 // pred_check_branch
        %223 = sbr.rel (%p221) target = $region32
      $region31: #{tpu_custom_call.1} parent=5 // pred_region
        // Predicated region
        $region33: #{tpu_custom_call.1} parent=31 // pred_check
          %p224 = pneg %p41
        $region34: #{tpu_custom_call.1} parent=31 // pred_check_branch
          %226 = sbr.rel (%p224) target = $region36
        $region35: #{tpu_custom_call.1} parent=31 // pred_region
          %s227 = sand.u32 %s31, 1
          %s228 = scalar_lea.sflag [#allocation3], %s227
          %s229 = sand.u32 %s31, 1
          %s230 = smul.addr %s229, 8
          %s231 = scalar_lea.vmem [#allocation2], %s230
          %s233 = ssub.s32 128, 128
          %234 = vsyncadd %s228, %s233
          %s235 = smul.addr %s21, 128
          %s236 = scalar_lea.hbm %s0, %s235
          %s238 = sshll.u32 %s231, 4
          %s239 = int_to_ptr.vmem [resolvable:$true] %s238
          %241 = dma.hbm_to_vmem [thread:$0]  %s236, 128, %s239, %s228
        $region36: #{tpu_custom_call.1} parent=31 // pred_fallthru
          _
        // Predicated region
        $region37: #{tpu_custom_call.1} parent=31 // pred_check
          %p242 = pneg %p67
        $region38: #{tpu_custom_call.1} parent=31 // pred_check_branch
          %244 = sbr.rel (%p242) target = $region40
        $region39: #{tpu_custom_call.1} parent=31 // pred_region
          %s245 = sand.u32 %s21, 1
          %s246 = scalar_lea.sflag [#allocation6], %s245
          %s247 = sand.u32 %s57, 1
          %s248 = smul.addr %s247, 8
          %s249 = scalar_lea.vmem [#allocation5], %s248
          %s251 = ssub.s32 128, 128
          %252 = vsyncadd %s246, %s251
          %s253 = smul.addr %s21, 128
          %s254 = scalar_lea.hbm %s1, %s253
          %s256 = sshll.u32 %s249, 4
          %s257 = int_to_ptr.vmem [resolvable:$true] %s256
          %259 = dma.hbm_to_vmem [thread:$0]  %s254, 128, %s257, %s246
        $region40: #{tpu_custom_call.1} parent=31 // pred_fallthru
          _
      $region32: #{tpu_custom_call.1} parent=5 // pred_fallthru
        _
      %p260 = scmp.le.s32.totalorder 1, %s21
      %p261 = scmp.lt.s32.totalorder %s21, 3
      %p262 = pnand %p260, %p261
      %p263 = pneg %p262
      // Predicated region
      $region41: #{tpu_custom_call.1} parent=5 // pred_check
        _
      $region42: #{tpu_custom_call.1} parent=5 // pred_check_branch
        %265 = sbr.rel (%p262) target = $region44
      $region43: #{tpu_custom_call.1} parent=5 // pred_region
        %s266 = ssub.s32 %s21, 1
        %s267 = sand.u32 %s34, 1
        %s268 = scalar_lea.sflag [#allocation3], %s267
        %s269 = sand.u32 %s34, 1
        %s270 = smul.addr %s269, 8
        %s271 = scalar_lea.vmem [#allocation2], %s270
        // Predicated region
        $region45: #{tpu_custom_call.1} parent=43 // pred_check
          %p272 = pneg %p47
        $region46: #{tpu_custom_call.1} parent=43 // pred_check_branch
          %274 = sbr.rel (%p272) target = $region48
        $region47: #{tpu_custom_call.1} parent=43 // pred_region
          %275 = dma.done %s268, 128
        $region48: #{tpu_custom_call.1} parent=43 // pred_fallthru
          _
        %s276 = sand.u32 %s26, 1
        %s277 = scalar_lea.sflag [#allocation6], %s276
        %s278 = sand.u32 %s60, 1
        %s279 = smul.addr %s278, 8
        %s280 = scalar_lea.vmem [#allocation5], %s279
        // Predicated region
        $region49: #{tpu_custom_call.1} parent=43 // pred_check
          %p281 = pneg %p73
        $region50: #{tpu_custom_call.1} parent=43 // pred_check_branch
          %283 = sbr.rel (%p281) target = $region52
        $region51: #{tpu_custom_call.1} parent=43 // pred_region
          %284 = dma.done %s277, 128
        $region52: #{tpu_custom_call.1} parent=43 // pred_fallthru
          _
        // Predicated region
        $region53: #{tpu_custom_call.1} parent=43 // pred_check
          %p285 = pneg %p136
        $region54: #{tpu_custom_call.1} parent=43 // pred_check_branch
          %287 = sbr.rel (%p285) target = $region56
        $region55: #{tpu_custom_call.1} parent=43 // pred_region
          %288 = dma.done [#allocation6], 256
        $region56: #{tpu_custom_call.1} parent=43 // pred_fallthru
          _
        %s289 = sand.u32 %s34, 1
        %s290 = scalar_lea.sflag [#allocation3], %s289
        %s291 = sand.u32 %s34, 1
        %s292 = smul.addr %s291, 8
        %s293 = scalar_lea.vmem [#allocation2], %s292
        %p294 = pneg %p47
        %p295 = pneg %p44
        %s296 = sand.u32 %s26, 1
        %s297 = scalar_lea.sflag [#allocation6], %s296
        %s298 = sand.u32 %s60, 1
        %s299 = smul.addr %s298, 8
        %s300 = scalar_lea.vmem [#allocation5], %s299
        %p301 = pneg %p73
        %p302 = pneg %p70
        %p303 = pneg %p94
        %p304 = pneg %p91
        %p305 = pneg %p115
        %p306 = pneg %p112
        %p307 = pneg %p136
        %p308 = pneg %p133
        %p309 = pneg %p157
        %p310 = pneg %p154
        %p311 = pneg %p183
        %p312 = pneg %p180
        %s313 = sand.u32 %s170, 1
        %s314 = scalar_lea.sflag [#allocation4], %s313
        %s315 = sand.u32 %s170, 1
        %s316 = smul.addr %s315, 8
        %s317 = scalar_lea.vmem [#allocation8], %s316
        %v318 = vld [vmem:[%s271] sm:$0xff]
        %v319 = vld [vmem:[%s280] sm:$0xff]
        %v320 = vld [vmem:[%s2] sm:$0x7]
        %v321 = vmul.f32 %v318, %v318
        %vm322 = vcmask 261120
        %v323 = vsel %vm322, %v321, 0.0
        %324 = vadd.xlane.f32.xlu0 %v323
        %v325 = vpop.xlane.xlu0 %324
        %v326 = vrcp.pop 32.0
        %v327 = vmul.f32 %v325, %v326
        %v328 = vadd.f32 %v327, 1e-06
        %v329 = vrsqrt.pop %v328
        %v330 = vmul.f32 %v318, %v329
        %v331 = vlaneseq
        %v332 = vshrl.u32 %v331, 7
        %v333 = vsub.s32 0, %v332
        %v334 = vrot.slane %v320, %v333
        %v335 = vmul.f32 %v330, %v334
        %v336 = vld [vmem:[%s3] sm:$0xff]
        %v337 = vld [vmem:[%s3 + $0x28] sm:$0xff]
        %v338 = vld [vmem:[%s3 + $0x50] sm:$0xff]
        %v339 = vld [vmem:[%s3 + $0x78] sm:$0xff]
        %v341 = vsel %vm322, %v335, 0
        %343 = vmatprep.subr.mxu0 0.0
        %344 = vmatpush1.msra.mxu0 %v336
        %345 = vmatprep.subr.mxu0 0.0
        %346 = vmatpush1.msra.mxu0 %v337
        %347 = vmatprep.subr.mxu0 0.0
        %348 = vmatpush1.msra.mxu0 %v338
        %349 = vmatprep.subr.mxu0 0.0
        %350 = vmatpush1.msra.mxu0 %v339
        %351 = vmatprep.subr.mxu0 0.0
        %352 = vmatpush1.msra.mxu0 0.0
        %353 = vmatprep.subr.mxu0 0.0
        %354 = vmatpush1.msra.mxu0 0.0
        %355 = vmatprep.subr.mxu0 0.0
        %356 = vmatpush1.msra.mxu0 0.0
        %357 = vmatprep.subr.mxu0 0.0
        %358 = vmatpush1.msra.mxu0 0.0
        %359 = vmatprep.subr.mxu0 0.0
        %360 = vmatpush1.msra.mxu0 0.0
        %361 = vmatprep.subr.mxu0 0.0
        %362 = vmatpush1.msra.mxu0 0.0
        %363 = vmatprep.subr.mxu0 0.0
        %364 = vmatpush1.msra.mxu0 0.0
        %365 = vmatprep.subr.mxu0 0.0
        %366 = vmatpush1.msra.mxu0 0.0
        %367 = vmatprep.subr.mxu0 0.0
        %368 = vmatpush1.msra.mxu0 0.0
        %369 = vmatprep.subr.mxu0 0.0
        %370 = vmatpush1.msra.mxu0 0.0
        %371 = vmatprep.subr.mxu0 0.0
        %372 = vmatpush1.msra.mxu0 0.0
        %373 = vmatprep.subr.mxu0 0.0
        %374 = vmatpush1.msra.mxu0 0.0
        %375 = vmatprep.subr.mxu0 0.0
        %376 = vmatpush1.msra.mxu0 0.0
        %377 = vmatprep.subr.mxu0 0.0
        %378 = vmatpush1.msra.mxu0 0.0
        %379 = vmatprep.subr.mxu0 0.0
        %380 = vmatpush1.msra.mxu0 0.0
        %381 = vmatprep.subr.mxu0 0.0
        %382 = vmatpush1.msra.mxu0 0.0
        %383 = vmatprep.subr.mxu0 0.0
        %384 = vmatpush1.msra.mxu0 0.0
        %385 = vmatprep.subr.mxu0 0.0
        %386 = vmatpush1.msra.mxu0 0.0
        %387 = vmatprep.subr.mxu0 0.0
        %388 = vmatpush1.msra.mxu0 0.0
        %389 = vmatprep.subr.mxu0 0.0
        %390 = vmatpush1.msra.mxu0 0.0
        %391 = vmatprep.subr.mxu0 0.0
        %392 = vmatpush1.msra.mxu0 0.0
        %393 = vmatprep.subr.mxu0 0.0
        %394 = vmatpush1.msra.mxu0 0.0
        %395 = vmatprep.subr.mxu0 0.0
        %396 = vmatpush1.msra.mxu0 0.0
        %397 = vmatprep.subr.mxu0 0.0
        %398 = vmatpush1.msra.mxu0 0.0
        %399 = vmatprep.subr.mxu0 0.0
        %400 = vmatpush1.msra.mxu0 0.0
        %401 = vmatprep.subr.mxu0 0.0
        %402 = vmatpush1.msra.mxu0 0.0
        %403 = vmatprep.subr.mxu0 0.0
        %404 = vmatpush1.msra.mxu0 0.0
        %405 = vmatprep.subr.mxu0 0.0
        %406 = vmatpush1.msra.mxu0 0.0
        %407 = vmatprep.mubr.f32.mxu0 0.0
        %408 = vmatmul.mubr.f32.gmra.mrb[0].mxu0 %v341
        %v409 = vpop.f32.mrb[0].mxu0
        %v410 = vadd.f32 0.0, %v409
        %v411 = vpop.f32.mrb[0].mxu0
        %412 = vdwg.mxu0
        %v413 = vld [vmem:[#allocation7] sm:$0xff]
        %v414 = vld [vmem:[#allocation7 + $0x8] sm:$0xff]
        %vm415 = vcmask 130048
        %v417 = vsel %vm415, %v319, 0
        %419 = vmatprep.subr.mxu0 0.0
        %420 = vmatpush1.msra.mxu0 %v413
        %421 = vmatprep.subr.mxu0 0.0
        %422 = vmatpush1.msra.mxu0 %v414
        %423 = vmatprep.subr.mxu0 0.0
        %424 = vmatpush1.msra.mxu0 0.0
        %425 = vmatprep.subr.mxu0 0.0
        %426 = vmatpush1.msra.mxu0 0.0
        %427 = vmatprep.subr.mxu0 0.0
        %428 = vmatpush1.msra.mxu0 0.0
        %429 = vmatprep.subr.mxu0 0.0
        %430 = vmatpush1.msra.mxu0 0.0
        %431 = vmatprep.subr.mxu0 0.0
        %432 = vmatpush1.msra.mxu0 0.0
        %433 = vmatprep.subr.mxu0 0.0
        %434 = vmatpush1.msra.mxu0 0.0
        %435 = vmatprep.subr.mxu0 0.0
        %436 = vmatpush1.msra.mxu0 0.0
        %437 = vmatprep.subr.mxu0 0.0
        %438 = vmatpush1.msra.mxu0 0.0
        %439 = vmatprep.subr.mxu0 0.0
        %440 = vmatpush1.msra.mxu0 0.0
        %441 = vmatprep.subr.mxu0 0.0
        %442 = vmatpush1.msra.mxu0 0.0
        %443 = vmatprep.subr.mxu0 0.0
        %444 = vmatpush1.msra.mxu0 0.0
        %445 = vmatprep.subr.mxu0 0.0
        %446 = vmatpush1.msra.mxu0 0.0
        %447 = vmatprep.subr.mxu0 0.0
        %448 = vmatpush1.msra.mxu0 0.0
        %449 = vmatprep.subr.mxu0 0.0
        %450 = vmatpush1.msra.mxu0 0.0
        %451 = vmatprep.subr.mxu0 0.0
        %452 = vmatpush1.msra.mxu0 0.0
        %453 = vmatprep.subr.mxu0 0.0
        %454 = vmatpush1.msra.mxu0 0.0
        %455 = vmatprep.subr.mxu0 0.0
        %456 = vmatpush1.msra.mxu0 0.0
        %457 = vmatprep.subr.mxu0 0.0
        %458 = vmatpush1.msra.mxu0 0.0
        %459 = vmatprep.subr.mxu0 0.0
        %460 = vmatpush1.msra.mxu0 0.0
        %461 = vmatprep.subr.mxu0 0.0
        %462 = vmatpush1.msra.mxu0 0.0
        %463 = vmatprep.subr.mxu0 0.0
        %464 = vmatpush1.msra.mxu0 0.0
        %465 = vmatprep.subr.mxu0 0.0
        %466 = vmatpush1.msra.mxu0 0.0
        %467 = vmatprep.subr.mxu0 0.0
        %468 = vmatpush1.msra.mxu0 0.0
        %469 = vmatprep.subr.mxu0 0.0
        %470 = vmatpush1.msra.mxu0 0.0
        %471 = vmatprep.subr.mxu0 0.0
        %472 = vmatpush1.msra.mxu0 0.0
        %473 = vmatprep.subr.mxu0 0.0
        %474 = vmatpush1.msra.mxu0 0.0
        %475 = vmatprep.subr.mxu0 0.0
        %476 = vmatpush1.msra.mxu0 0.0
        %477 = vmatprep.subr.mxu0 0.0
        %478 = vmatpush1.msra.mxu0 0.0
        %479 = vmatprep.subr.mxu0 0.0
        %480 = vmatpush1.msra.mxu0 0.0
        %481 = vmatprep.subr.mxu0 0.0
        %482 = vmatpush1.msra.mxu0 0.0
        %483 = vmatprep.mubr.f32.mxu0 0.0
        %484 = vmatmul.mubr.f32.gmra.mrb[0].mxu0 %v417
        %v485 = vpop.f32.mrb[0].mxu0
        %v486 = vadd.f32 0.0, %v485
        %v487 = vpop.f32.mrb[0].mxu0
        %488 = vdwg.mxu0
        %v489 = vld [vmem:[%s3 + $0x8] sm:$0xff]
        %v490 = vld [vmem:[%s3 + $0x30] sm:$0xff]
        %v491 = vld [vmem:[%s3 + $0x58] sm:$0xff]
        %v492 = vld [vmem:[%s3 + $0x80] sm:$0xff]
        %494 = vrot.lane.b32.xlu0 %v410, 120
        %v495 = vpop.permute.xlu0 %494
        %496 = vrot.lane.b32.xlu0 %v410, 112
        %v497 = vpop.permute.xlu0 %496
        %498 = vrot.lane.b32.xlu0 %v410, 104
        %v499 = vpop.permute.xlu0 %498
        %501 = vrot.lane.b32.xlu0 %v486, 120
        %v502 = vpop.permute.xlu0 %501
        %503 = vrot.lane.b32.xlu0 %v486, 112
        %v504 = vpop.permute.xlu0 %503
        %505 = vrot.lane.b32.xlu0 %v486, 104
        %v506 = vpop.permute.xlu0 %505
        %vm507 = vcmask 64512
        %v508 = vsel %vm507, %v410, 0
        %v510 = vsel %vm507, %v486, 0
        %512 = vmatprep.subr.mxu0 0.0
        %513 = vmatpush1.xpose.msra.mxu0 %v510
        %514 = vmatprep.subr.mxu0 0.0
        %515 = vmatpush1.xpose.msra.mxu0 0.0
        %516 = vmatprep.subr.mxu0 0.0
        %517 = vmatpush1.xpose.msra.mxu0 0.0
        %518 = vmatprep.subr.mxu0 0.0
        %519 = vmatpush1.xpose.msra.mxu0 0.0
        %520 = vmatprep.subr.mxu0 0.0
        %521 = vmatpush1.xpose.msra.mxu0 0.0
        %522 = vmatprep.subr.mxu0 0.0
        %523 = vmatpush1.xpose.msra.mxu0 0.0
        %524 = vmatprep.subr.mxu0 0.0
        %525 = vmatpush1.xpose.msra.mxu0 0.0
        %526 = vmatprep.subr.mxu0 0.0
        %527 = vmatpush1.xpose.msra.mxu0 0.0
        %528 = vmatprep.subr.mxu0 0.0
        %529 = vmatpush1.xpose.msra.mxu0 0.0
        %530 = vmatprep.subr.mxu0 0.0
        %531 = vmatpush1.xpose.msra.mxu0 0.0
        %532 = vmatprep.subr.mxu0 0.0
        %533 = vmatpush1.xpose.msra.mxu0 0.0
        %534 = vmatprep.subr.mxu0 0.0
        %535 = vmatpush1.xpose.msra.mxu0 0.0
        %536 = vmatprep.subr.mxu0 0.0
        %537 = vmatpush1.xpose.msra.mxu0 0.0
        %538 = vmatprep.subr.mxu0 0.0
        %539 = vmatpush1.xpose.msra.mxu0 0.0
        %540 = vmatprep.subr.mxu0 0.0
        %541 = vmatpush1.xpose.msra.mxu0 0.0
        %542 = vmatprep.subr.mxu0 0.0
        %543 = vmatpush1.xpose.msra.mxu0 0.0
        %544 = vmatprep.subr.mxu0 0.0
        %545 = vmatpush1.xpose.msra.mxu0 0.0
        %546 = vmatprep.subr.mxu0 0.0
        %547 = vmatpush1.xpose.msra.mxu0 0.0
        %548 = vmatprep.subr.mxu0 0.0
        %549 = vmatpush1.xpose.msra.mxu0 0.0
        %550 = vmatprep.subr.mxu0 0.0
        %551 = vmatpush1.xpose.msra.mxu0 0.0
        %552 = vmatprep.subr.mxu0 0.0
        %553 = vmatpush1.xpose.msra.mxu0 0.0
        %554 = vmatprep.subr.mxu0 0.0
        %555 = vmatpush1.xpose.msra.mxu0 0.0
        %556 = vmatprep.subr.mxu0 0.0
        %557 = vmatpush1.xpose.msra.mxu0 0.0
        %558 = vmatprep.subr.mxu0 0.0
        %559 = vmatpush1.xpose.msra.mxu0 0.0
        %560 = vmatprep.subr.mxu0 0.0
        %561 = vmatpush1.xpose.msra.mxu0 0.0
        %562 = vmatprep.subr.mxu0 0.0
        %563 = vmatpush1.xpose.msra.mxu0 0.0
        %564 = vmatprep.subr.mxu0 0.0
        %565 = vmatpush1.xpose.msra.mxu0 0.0
        %566 = vmatprep.subr.mxu0 0.0
        %567 = vmatpush1.xpose.msra.mxu0 0.0
        %568 = vmatprep.subr.mxu0 0.0
        %569 = vmatpush1.xpose.msra.mxu0 0.0
        %570 = vmatprep.subr.mxu0 0.0
        %571 = vmatpush1.xpose.msra.mxu0 0.0
        %572 = vmatprep.subr.mxu0 0.0
        %573 = vmatpush1.xpose.msra.mxu0 0.0
        %574 = vmatprep.subr.mxu0 0.0
        %575 = vmatpush1.xpose.msra.mxu0 0.0
        %576 = vmatprep.mubr.f32.mxu0 0.0
        %577 = vmatmul.mubr.f32.gmra.mrb[0].mxu0 %v508
        %v578 = vpop.f32.mrb[0].mxu0
        %v579 = vadd.f32 0.0, %v578
        %v580 = vpop.f32.mrb[0].mxu0
        %581 = vdwg.mxu0
        %v582 = vsel %vm507, %v495, 0
        %v584 = vsel %vm507, %v502, 0
        %586 = vmatprep.subr.mxu0 0.0
        %587 = vmatpush1.xpose.msra.mxu0 %v584
        %588 = vmatprep.subr.mxu0 0.0
        %589 = vmatpush1.xpose.msra.mxu0 0.0
        %590 = vmatprep.subr.mxu0 0.0
        %591 = vmatpush1.xpose.msra.mxu0 0.0
        %592 = vmatprep.subr.mxu0 0.0
        %593 = vmatpush1.xpose.msra.mxu0 0.0
        %594 = vmatprep.subr.mxu0 0.0
        %595 = vmatpush1.xpose.msra.mxu0 0.0
        %596 = vmatprep.subr.mxu0 0.0
        %597 = vmatpush1.xpose.msra.mxu0 0.0
        %598 = vmatprep.subr.mxu0 0.0
        %599 = vmatpush1.xpose.msra.mxu0 0.0
        %600 = vmatprep.subr.mxu0 0.0
        %601 = vmatpush1.xpose.msra.mxu0 0.0
        %602 = vmatprep.subr.mxu0 0.0
        %603 = vmatpush1.xpose.msra.mxu0 0.0
        %604 = vmatprep.subr.mxu0 0.0
        %605 = vmatpush1.xpose.msra.mxu0 0.0
        %606 = vmatprep.subr.mxu0 0.0
        %607 = vmatpush1.xpose.msra.mxu0 0.0
        %608 = vmatprep.subr.mxu0 0.0
        %609 = vmatpush1.xpose.msra.mxu0 0.0
        %610 = vmatprep.subr.mxu0 0.0
        %611 = vmatpush1.xpose.msra.mxu0 0.0
        %612 = vmatprep.subr.mxu0 0.0
        %613 = vmatpush1.xpose.msra.mxu0 0.0
        %614 = vmatprep.subr.mxu0 0.0
        %615 = vmatpush1.xpose.msra.mxu0 0.0
        %616 = vmatprep.subr.mxu0 0.0
        %617 = vmatpush1.xpose.msra.mxu0 0.0
        %618 = vmatprep.subr.mxu0 0.0
        %619 = vmatpush1.xpose.msra.mxu0 0.0
        %620 = vmatprep.subr.mxu0 0.0
        %621 = vmatpush1.xpose.msra.mxu0 0.0
        %622 = vmatprep.subr.mxu0 0.0
        %623 = vmatpush1.xpose.msra.mxu0 0.0
        %624 = vmatprep.subr.mxu0 0.0
        %625 = vmatpush1.xpose.msra.mxu0 0.0
        %626 = vmatprep.subr.mxu0 0.0
        %627 = vmatpush1.xpose.msra.mxu0 0.0
        %628 = vmatprep.subr.mxu0 0.0
        %629 = vmatpush1.xpose.msra.mxu0 0.0
        %630 = vmatprep.subr.mxu0 0.0
        %631 = vmatpush1.xpose.msra.mxu0 0.0
        %632 = vmatprep.subr.mxu0 0.0
        %633 = vmatpush1.xpose.msra.mxu0 0.0
        %634 = vmatprep.subr.mxu0 0.0
        %635 = vmatpush1.xpose.msra.mxu0 0.0
        %636 = vmatprep.subr.mxu0 0.0
        %637 = vmatpush1.xpose.msra.mxu0 0.0
        %638 = vmatprep.subr.mxu0 0.0
        %639 = vmatpush1.xpose.msra.mxu0 0.0
        %640 = vmatprep.subr.mxu0 0.0
        %641 = vmatpush1.xpose.msra.mxu0 0.0
        %642 = vmatprep.subr.mxu0 0.0
        %643 = vmatpush1.xpose.msra.mxu0 0.0
        %644 = vmatprep.subr.mxu0 0.0
        %645 = vmatpush1.xpose.msra.mxu0 0.0
        %646 = vmatprep.subr.mxu0 0.0
        %647 = vmatpush1.xpose.msra.mxu0 0.0
        %648 = vmatprep.subr.mxu0 0.0
        %649 = vmatpush1.xpose.msra.mxu0 0.0
        %650 = vmatprep.mubr.f32.mxu0 0.0
        %651 = vmatmul.mubr.f32.gmra.mrb[0].mxu0 %v582
        %v652 = vpop.f32.mrb[0].mxu0
        %v653 = vadd.f32 0.0, %v652
        %v654 = vpop.f32.mrb[0].mxu0
        %655 = vdwg.mxu0
        %v656 = vsel %vm507, %v497, 0
        %v658 = vsel %vm507, %v504, 0
        %660 = vmatprep.subr.mxu0 0.0
        %661 = vmatpush1.xpose.msra.mxu0 %v658
        %662 = vmatprep.subr.mxu0 0.0
        %663 = vmatpush1.xpose.msra.mxu0 0.0
        %664 = vmatprep.subr.mxu0 0.0
        %665 = vmatpush1.xpose.msra.mxu0 0.0
        %666 = vmatprep.subr.mxu0 0.0
        %667 = vmatpush1.xpose.msra.mxu0 0.0
        %668 = vmatprep.subr.mxu0 0.0
        %669 = vmatpush1.xpose.msra.mxu0 0.0
        %670 = vmatprep.subr.mxu0 0.0
        %671 = vmatpush1.xpose.msra.mxu0 0.0
        %672 = vmatprep.subr.mxu0 0.0
        %673 = vmatpush1.xpose.msra.mxu0 0.0
        %674 = vmatprep.subr.mxu0 0.0
        %675 = vmatpush1.xpose.msra.mxu0 0.0
        %676 = vmatprep.subr.mxu0 0.0
        %677 = vmatpush1.xpose.msra.mxu0 0.0
        %678 = vmatprep.subr.mxu0 0.0
        %679 = vmatpush1.xpose.msra.mxu0 0.0
        %680 = vmatprep.subr.mxu0 0.0
        %681 = vmatpush1.xpose.msra.mxu0 0.0
        %682 = vmatprep.subr.mxu0 0.0
        %683 = vmatpush1.xpose.msra.mxu0 0.0
        %684 = vmatprep.subr.mxu0 0.0
        %685 = vmatpush1.xpose.msra.mxu0 0.0
        %686 = vmatprep.subr.mxu0 0.0
        %687 = vmatpush1.xpose.msra.mxu0 0.0
        %688 = vmatprep.subr.mxu0 0.0
        %689 = vmatpush1.xpose.msra.mxu0 0.0
        %690 = vmatprep.subr.mxu0 0.0
        %691 = vmatpush1.xpose.msra.mxu0 0.0
        %692 = vmatprep.subr.mxu0 0.0
        %693 = vmatpush1.xpose.msra.mxu0 0.0
        %694 = vmatprep.subr.mxu0 0.0
        %695 = vmatpush1.xpose.msra.mxu0 0.0
        %696 = vmatprep.subr.mxu0 0.0
        %697 = vmatpush1.xpose.msra.mxu0 0.0
        %698 = vmatprep.subr.mxu0 0.0
        %699 = vmatpush1.xpose.msra.mxu0 0.0
        %700 = vmatprep.subr.mxu0 0.0
        %701 = vmatpush1.xpose.msra.mxu0 0.0
        %702 = vmatprep.subr.mxu0 0.0
        %703 = vmatpush1.xpose.msra.mxu0 0.0
        %704 = vmatprep.subr.mxu0 0.0
        %705 = vmatpush1.xpose.msra.mxu0 0.0
        %706 = vmatprep.subr.mxu0 0.0
        %707 = vmatpush1.xpose.msra.mxu0 0.0
        %708 = vmatprep.subr.mxu0 0.0
        %709 = vmatpush1.xpose.msra.mxu0 0.0
        %710 = vmatprep.subr.mxu0 0.0
        %711 = vmatpush1.xpose.msra.mxu0 0.0
        %712 = vmatprep.subr.mxu0 0.0
        %713 = vmatpush1.xpose.msra.mxu0 0.0
        %714 = vmatprep.subr.mxu0 0.0
        %715 = vmatpush1.xpose.msra.mxu0 0.0
        %716 = vmatprep.subr.mxu0 0.0
        %717 = vmatpush1.xpose.msra.mxu0 0.0
        %718 = vmatprep.subr.mxu0 0.0
        %719 = vmatpush1.xpose.msra.mxu0 0.0
        %720 = vmatprep.subr.mxu0 0.0
        %721 = vmatpush1.xpose.msra.mxu0 0.0
        %722 = vmatprep.subr.mxu0 0.0
        %723 = vmatpush1.xpose.msra.mxu0 0.0
        %724 = vmatprep.mubr.f32.mxu0 0.0
        %725 = vmatmul.mubr.f32.gmra.mrb[0].mxu0 %v656
        %v726 = vpop.f32.mrb[0].mxu0
        %v727 = vadd.f32 0.0, %v726
        %v728 = vpop.f32.mrb[0].mxu0
        %729 = vdwg.mxu0
        %v730 = vsel %vm507, %v499, 0
        %v732 = vsel %vm507, %v506, 0
        %734 = vmatprep.subr.mxu0 0.0
        %735 = vmatpush1.xpose.msra.mxu0 %v732
        %736 = vmatprep.subr.mxu0 0.0
        %737 = vmatpush1.xpose.msra.mxu0 0.0
        %738 = vmatprep.subr.mxu0 0.0
        %739 = vmatpush1.xpose.msra.mxu0 0.0
        %740 = vmatprep.subr.mxu0 0.0
        %741 = vmatpush1.xpose.msra.mxu0 0.0
        %742 = vmatprep.subr.mxu0 0.0
        %743 = vmatpush1.xpose.msra.mxu0 0.0
        %744 = vmatprep.subr.mxu0 0.0
        %745 = vmatpush1.xpose.msra.mxu0 0.0
        %746 = vmatprep.subr.mxu0 0.0
        %747 = vmatpush1.xpose.msra.mxu0 0.0
        %748 = vmatprep.subr.mxu0 0.0
        %749 = vmatpush1.xpose.msra.mxu0 0.0
        %750 = vmatprep.subr.mxu0 0.0
        %751 = vmatpush1.xpose.msra.mxu0 0.0
        %752 = vmatprep.subr.mxu0 0.0
        %753 = vmatpush1.xpose.msra.mxu0 0.0
        %754 = vmatprep.subr.mxu0 0.0
        %755 = vmatpush1.xpose.msra.mxu0 0.0
        %756 = vmatprep.subr.mxu0 0.0
        %757 = vmatpush1.xpose.msra.mxu0 0.0
        %758 = vmatprep.subr.mxu0 0.0
        %759 = vmatpush1.xpose.msra.mxu0 0.0
        %760 = vmatprep.subr.mxu0 0.0
        %761 = vmatpush1.xpose.msra.mxu0 0.0
        %762 = vmatprep.subr.mxu0 0.0
        %763 = vmatpush1.xpose.msra.mxu0 0.0
        %764 = vmatprep.subr.mxu0 0.0
        %765 = vmatpush1.xpose.msra.mxu0 0.0
        %766 = vmatprep.subr.mxu0 0.0
        %767 = vmatpush1.xpose.msra.mxu0 0.0
        %768 = vmatprep.subr.mxu0 0.0
        %769 = vmatpush1.xpose.msra.mxu0 0.0
        %770 = vmatprep.subr.mxu0 0.0
        %771 = vmatpush1.xpose.msra.mxu0 0.0
        %772 = vmatprep.subr.mxu0 0.0
        %773 = vmatpush1.xpose.msra.mxu0 0.0
        %774 = vmatprep.subr.mxu0 0.0
        %775 = vmatpush1.xpose.msra.mxu0 0.0
        %776 = vmatprep.subr.mxu0 0.0
        %777 = vmatpush1.xpose.msra.mxu0 0.0
        %778 = vmatprep.subr.mxu0 0.0
        %779 = vmatpush1.xpose.msra.mxu0 0.0
        %780 = vmatprep.subr.mxu0 0.0
        %781 = vmatpush1.xpose.msra.mxu0 0.0
        %782 = vmatprep.subr.mxu0 0.0
        %783 = vmatpush1.xpose.msra.mxu0 0.0
        %784 = vmatprep.subr.mxu0 0.0
        %785 = vmatpush1.xpose.msra.mxu0 0.0
        %786 = vmatprep.subr.mxu0 0.0
        %787 = vmatpush1.xpose.msra.mxu0 0.0
        %788 = vmatprep.subr.mxu0 0.0
        %789 = vmatpush1.xpose.msra.mxu0 0.0
        %790 = vmatprep.subr.mxu0 0.0
        %791 = vmatpush1.xpose.msra.mxu0 0.0
        %792 = vmatprep.subr.mxu0 0.0
        %793 = vmatpush1.xpose.msra.mxu0 0.0
        %794 = vmatprep.subr.mxu0 0.0
        %795 = vmatpush1.xpose.msra.mxu0 0.0
        %796 = vmatprep.subr.mxu0 0.0
        %797 = vmatpush1.xpose.msra.mxu0 0.0
        %798 = vmatprep.mubr.f32.mxu0 0.0
        %799 = vmatmul.mubr.f32.gmra.mrb[0].mxu0 %v730
        %v800 = vpop.f32.mrb[0].mxu0
        %v801 = vadd.f32 0.0, %v800
        %v802 = vpop.f32.mrb[0].mxu0
        %803 = vdwg.mxu0
        %v804 = vsel %vm507, %v579, -inf
        %805 = vmax.xlane.f32.xlu0 %v804
        %v806 = vpop.xlane.xlu0 %805
        %v807 = vsel %vm507, %v653, -inf
        %808 = vmax.xlane.f32.xlu0 %v807
        %v809 = vpop.xlane.xlu0 %808
        %v810 = vsel %vm507, %v727, -inf
        %811 = vmax.xlane.f32.xlu0 %v810
        %v812 = vpop.xlane.xlu0 %811
        %v813 = vsel %vm507, %v801, -inf
        %814 = vmax.xlane.f32.xlu0 %v813
        %v815 = vpop.xlane.xlu0 %814
        %v816 = vsub.f32 %v579, %v806
        %v817 = vsub.f32 %v653, %v809
        %v818 = vsub.f32 %v727, %v812
        %v819 = vsub.f32 %v801, %v815
        %v820 = vmul.f32 %v816, 1.442695
        %v821 = vpow.pop %v820
        %v822 = vmul.f32 %v817, 1.442695
        %v823 = vpow.pop %v822
        %v824 = vmul.f32 %v818, 1.442695
        %v825 = vpow.pop %v824
        %v826 = vmul.f32 %v819, 1.442695
        %v827 = vpow.pop %v826
        %v828 = vsel %vm507, %v821, 0.0
        %829 = vadd.xlane.f32.xlu0 %v828
        %v830 = vpop.xlane.xlu0 %829
        %v831 = vsel %vm507, %v823, 0.0
        %832 = vadd.xlane.f32.xlu0 %v831
        %v833 = vpop.xlane.xlu0 %832
        %v834 = vsel %vm507, %v825, 0.0
        %835 = vadd.xlane.f32.xlu0 %v834
        %v836 = vpop.xlane.xlu0 %835
        %v837 = vsel %vm507, %v827, 0.0
        %838 = vadd.xlane.f32.xlu0 %v837
        %v839 = vpop.xlane.xlu0 %838
        %v840 = vrcp.pop %v830
        %v841 = vrcp.pop %v833
        %v842 = vrcp.pop %v836
        %v843 = vrcp.pop %v839
        %v844 = vmul.f32 %v821, %v840
        %v845 = vmul.f32 %v823, %v841
        %v846 = vmul.f32 %v825, %v842
        %v847 = vmul.f32 %v827, %v843
        %848 = vrot.lane.b32.xlu0 %v486, 96
        %v849 = vpop.permute.xlu0 %848
        %v852 = vsel %vm507, %v844, 0
        %854 = vmatprep.subr.mxu0 0.0
        %855 = vmatpush1.msra.mxu0 %v849
        %856 = vmatprep.subr.mxu0 0.0
        %857 = vmatpush1.msra.mxu0 0.0
        %858 = vmatprep.subr.mxu0 0.0
        %859 = vmatpush1.msra.mxu0 0.0
        %860 = vmatprep.subr.mxu0 0.0
        %861 = vmatpush1.msra.mxu0 0.0
        %862 = vmatprep.subr.mxu0 0.0
        %863 = vmatpush1.msra.mxu0 0.0
        %864 = vmatprep.subr.mxu0 0.0
        %865 = vmatpush1.msra.mxu0 0.0
        %866 = vmatprep.subr.mxu0 0.0
        %867 = vmatpush1.msra.mxu0 0.0
        %868 = vmatprep.subr.mxu0 0.0
        %869 = vmatpush1.msra.mxu0 0.0
        %870 = vmatprep.subr.mxu0 0.0
        %871 = vmatpush1.msra.mxu0 0.0
        %872 = vmatprep.subr.mxu0 0.0
        %873 = vmatpush1.msra.mxu0 0.0
        %874 = vmatprep.subr.mxu0 0.0
        %875 = vmatpush1.msra.mxu0 0.0
        %876 = vmatprep.subr.mxu0 0.0
        %877 = vmatpush1.msra.mxu0 0.0
        %878 = vmatprep.subr.mxu0 0.0
        %879 = vmatpush1.msra.mxu0 0.0
        %880 = vmatprep.subr.mxu0 0.0
        %881 = vmatpush1.msra.mxu0 0.0
        %882 = vmatprep.subr.mxu0 0.0
        %883 = vmatpush1.msra.mxu0 0.0
        %884 = vmatprep.subr.mxu0 0.0
        %885 = vmatpush1.msra.mxu0 0.0
        %886 = vmatprep.subr.mxu0 0.0
        %887 = vmatpush1.msra.mxu0 0.0
        %888 = vmatprep.subr.mxu0 0.0
        %889 = vmatpush1.msra.mxu0 0.0
        %890 = vmatprep.subr.mxu0 0.0
        %891 = vmatpush1.msra.mxu0 0.0
        %892 = vmatprep.subr.mxu0 0.0
        %893 = vmatpush1.msra.mxu0 0.0
        %894 = vmatprep.subr.mxu0 0.0
        %895 = vmatpush1.msra.mxu0 0.0
        %896 = vmatprep.subr.mxu0 0.0
        %897 = vmatpush1.msra.mxu0 0.0
        %898 = vmatprep.subr.mxu0 0.0
        %899 = vmatpush1.msra.mxu0 0.0
        %900 = vmatprep.subr.mxu0 0.0
        %901 = vmatpush1.msra.mxu0 0.0
        %902 = vmatprep.subr.mxu0 0.0
        %903 = vmatpush1.msra.mxu0 0.0
        %904 = vmatprep.subr.mxu0 0.0
        %905 = vmatpush1.msra.mxu0 0.0
        %906 = vmatprep.subr.mxu0 0.0
        %907 = vmatpush1.msra.mxu0 0.0
        %908 = vmatprep.subr.mxu0 0.0
        %909 = vmatpush1.msra.mxu0 0.0
        %910 = vmatprep.subr.mxu0 0.0
        %911 = vmatpush1.msra.mxu0 0.0
        %912 = vmatprep.subr.mxu0 0.0
        %913 = vmatpush1.msra.mxu0 0.0
        %914 = vmatprep.subr.mxu0 0.0
        %915 = vmatpush1.msra.mxu0 0.0
        %916 = vmatprep.subr.mxu0 0.0
        %917 = vmatpush1.msra.mxu0 0.0
        %918 = vmatprep.mubr.f32.mxu0 0.0
        %919 = vmatmul.mubr.f32.gmra.mrb[0].mxu0 %v852
        %v920 = vpop.f32.mrb[0].mxu0
        %v921 = vadd.f32 0.0, %v920
        %v922 = vpop.f32.mrb[0].mxu0
        %923 = vdwg.mxu0
        %924 = vrot.lane.b32.xlu0 %v502, 96
        %v925 = vpop.permute.xlu0 %924
        %v928 = vsel %vm507, %v845, 0
        %930 = vmatprep.subr.mxu0 0.0
        %931 = vmatpush1.msra.mxu0 %v925
        %932 = vmatprep.subr.mxu0 0.0
        %933 = vmatpush1.msra.mxu0 0.0
        %934 = vmatprep.subr.mxu0 0.0
        %935 = vmatpush1.msra.mxu0 0.0
        %936 = vmatprep.subr.mxu0 0.0
        %937 = vmatpush1.msra.mxu0 0.0
        %938 = vmatprep.subr.mxu0 0.0
        %939 = vmatpush1.msra.mxu0 0.0
        %940 = vmatprep.subr.mxu0 0.0
        %941 = vmatpush1.msra.mxu0 0.0
        %942 = vmatprep.subr.mxu0 0.0
        %943 = vmatpush1.msra.mxu0 0.0
        %944 = vmatprep.subr.mxu0 0.0
        %945 = vmatpush1.msra.mxu0 0.0
        %946 = vmatprep.subr.mxu0 0.0
        %947 = vmatpush1.msra.mxu0 0.0
        %948 = vmatprep.subr.mxu0 0.0
        %949 = vmatpush1.msra.mxu0 0.0
        %950 = vmatprep.subr.mxu0 0.0
        %951 = vmatpush1.msra.mxu0 0.0
        %952 = vmatprep.subr.mxu0 0.0
        %953 = vmatpush1.msra.mxu0 0.0
        %954 = vmatprep.subr.mxu0 0.0
        %955 = vmatpush1.msra.mxu0 0.0
        %956 = vmatprep.subr.mxu0 0.0
        %957 = vmatpush1.msra.mxu0 0.0
        %958 = vmatprep.subr.mxu0 0.0
        %959 = vmatpush1.msra.mxu0 0.0
        %960 = vmatprep.subr.mxu0 0.0
        %961 = vmatpush1.msra.mxu0 0.0
        %962 = vmatprep.subr.mxu0 0.0
        %963 = vmatpush1.msra.mxu0 0.0
        %964 = vmatprep.subr.mxu0 0.0
        %965 = vmatpush1.msra.mxu0 0.0
        %966 = vmatprep.subr.mxu0 0.0
        %967 = vmatpush1.msra.mxu0 0.0
        %968 = vmatprep.subr.mxu0 0.0
        %969 = vmatpush1.msra.mxu0 0.0
        %970 = vmatprep.subr.mxu0 0.0
        %971 = vmatpush1.msra.mxu0 0.0
        %972 = vmatprep.subr.mxu0 0.0
        %973 = vmatpush1.msra.mxu0 0.0
        %974 = vmatprep.subr.mxu0 0.0
        %975 = vmatpush1.msra.mxu0 0.0
        %976 = vmatprep.subr.mxu0 0.0
        %977 = vmatpush1.msra.mxu0 0.0
        %978 = vmatprep.subr.mxu0 0.0
        %979 = vmatpush1.msra.mxu0 0.0
        %980 = vmatprep.subr.mxu0 0.0
        %981 = vmatpush1.msra.mxu0 0.0
        %982 = vmatprep.subr.mxu0 0.0
        %983 = vmatpush1.msra.mxu0 0.0
        %984 = vmatprep.subr.mxu0 0.0
        %985 = vmatpush1.msra.mxu0 0.0
        %986 = vmatprep.subr.mxu0 0.0
        %987 = vmatpush1.msra.mxu0 0.0
        %988 = vmatprep.subr.mxu0 0.0
        %989 = vmatpush1.msra.mxu0 0.0
        %990 = vmatprep.subr.mxu0 0.0
        %991 = vmatpush1.msra.mxu0 0.0
        %992 = vmatprep.subr.mxu0 0.0
        %993 = vmatpush1.msra.mxu0 0.0
        %994 = vmatprep.mubr.f32.mxu0 0.0
        %995 = vmatmul.mubr.f32.gmra.mrb[0].mxu0 %v928
        %v996 = vpop.f32.mrb[0].mxu0
        %v997 = vadd.f32 0.0, %v996
        %v998 = vpop.f32.mrb[0].mxu0
        %999 = vdwg.mxu0
        %1000 = vrot.lane.b32.xlu0 %v504, 96
        %v1001 = vpop.permute.xlu0 %1000
        %v1004 = vsel %vm507, %v846, 0
        %1006 = vmatprep.subr.mxu0 0.0
        %1007 = vmatpush1.msra.mxu0 %v1001
        %1008 = vmatprep.subr.mxu0 0.0
        %1009 = vmatpush1.msra.mxu0 0.0
        %1010 = vmatprep.subr.mxu0 0.0
        %1011 = vmatpush1.msra.mxu0 0.0
        %1012 = vmatprep.subr.mxu0 0.0
        %1013 = vmatpush1.msra.mxu0 0.0
        %1014 = vmatprep.subr.mxu0 0.0
        %1015 = vmatpush1.msra.mxu0 0.0
        %1016 = vmatprep.subr.mxu0 0.0
        %1017 = vmatpush1.msra.mxu0 0.0
        %1018 = vmatprep.subr.mxu0 0.0
        %1019 = vmatpush1.msra.mxu0 0.0
        %1020 = vmatprep.subr.mxu0 0.0
        %1021 = vmatpush1.msra.mxu0 0.0
        %1022 = vmatprep.subr.mxu0 0.0
        %1023 = vmatpush1.msra.mxu0 0.0
        %1024 = vmatprep.subr.mxu0 0.0
        %1025 = vmatpush1.msra.mxu0 0.0
        %1026 = vmatprep.subr.mxu0 0.0
        %1027 = vmatpush1.msra.mxu0 0.0
        %1028 = vmatprep.subr.mxu0 0.0
        %1029 = vmatpush1.msra.mxu0 0.0
        %1030 = vmatprep.subr.mxu0 0.0
        %1031 = vmatpush1.msra.mxu0 0.0
        %1032 = vmatprep.subr.mxu0 0.0
        %1033 = vmatpush1.msra.mxu0 0.0
        %1034 = vmatprep.subr.mxu0 0.0
        %1035 = vmatpush1.msra.mxu0 0.0
        %1036 = vmatprep.subr.mxu0 0.0
        %1037 = vmatpush1.msra.mxu0 0.0
        %1038 = vmatprep.subr.mxu0 0.0
        %1039 = vmatpush1.msra.mxu0 0.0
        %1040 = vmatprep.subr.mxu0 0.0
        %1041 = vmatpush1.msra.mxu0 0.0
        %1042 = vmatprep.subr.mxu0 0.0
        %1043 = vmatpush1.msra.mxu0 0.0
        %1044 = vmatprep.subr.mxu0 0.0
        %1045 = vmatpush1.msra.mxu0 0.0
        %1046 = vmatprep.subr.mxu0 0.0
        %1047 = vmatpush1.msra.mxu0 0.0
        %1048 = vmatprep.subr.mxu0 0.0
        %1049 = vmatpush1.msra.mxu0 0.0
        %1050 = vmatprep.subr.mxu0 0.0
        %1051 = vmatpush1.msra.mxu0 0.0
        %1052 = vmatprep.subr.mxu0 0.0
        %1053 = vmatpush1.msra.mxu0 0.0
        %1054 = vmatprep.subr.mxu0 0.0
        %1055 = vmatpush1.msra.mxu0 0.0
        %1056 = vmatprep.subr.mxu0 0.0
        %1057 = vmatpush1.msra.mxu0 0.0
        %1058 = vmatprep.subr.mxu0 0.0
        %1059 = vmatpush1.msra.mxu0 0.0
        %1060 = vmatprep.subr.mxu0 0.0
        %1061 = vmatpush1.msra.mxu0 0.0
        %1062 = vmatprep.subr.mxu0 0.0
        %1063 = vmatpush1.msra.mxu0 0.0
        %1064 = vmatprep.subr.mxu0 0.0
        %1065 = vmatpush1.msra.mxu0 0.0
        %1066 = vmatprep.subr.mxu0 0.0
        %1067 = vmatpush1.msra.mxu0 0.0
        %1068 = vmatprep.subr.mxu0 0.0
        %1069 = vmatpush1.msra.mxu0 0.0
        %1070 = vmatprep.mubr.f32.mxu0 0.0
        %1071 = vmatmul.mubr.f32.gmra.mrb[0].mxu0 %v1004
        %v1072 = vpop.f32.mrb[0].mxu0
        %v1073 = vadd.f32 0.0, %v1072
        %v1074 = vpop.f32.mrb[0].mxu0
        %1075 = vdwg.mxu0
        %1076 = vrot.lane.b32.xlu0 %v506, 96
        %v1077 = vpop.permute.xlu0 %1076
        %v1080 = vsel %vm507, %v847, 0
        %1082 = vmatprep.subr.mxu0 0.0
        %1083 = vmatpush1.msra.mxu0 %v1077
        %1084 = vmatprep.subr.mxu0 0.0
        %1085 = vmatpush1.msra.mxu0 0.0
        %1086 = vmatprep.subr.mxu0 0.0
        %1087 = vmatpush1.msra.mxu0 0.0
        %1088 = vmatprep.subr.mxu0 0.0
        %1089 = vmatpush1.msra.mxu0 0.0
        %1090 = vmatprep.subr.mxu0 0.0
        %1091 = vmatpush1.msra.mxu0 0.0
        %1092 = vmatprep.subr.mxu0 0.0
        %1093 = vmatpush1.msra.mxu0 0.0
        %1094 = vmatprep.subr.mxu0 0.0
        %1095 = vmatpush1.msra.mxu0 0.0
        %1096 = vmatprep.subr.mxu0 0.0
        %1097 = vmatpush1.msra.mxu0 0.0
        %1098 = vmatprep.subr.mxu0 0.0
        %1099 = vmatpush1.msra.mxu0 0.0
        %1100 = vmatprep.subr.mxu0 0.0
        %1101 = vmatpush1.msra.mxu0 0.0
        %1102 = vmatprep.subr.mxu0 0.0
        %1103 = vmatpush1.msra.mxu0 0.0
        %1104 = vmatprep.subr.mxu0 0.0
        %1105 = vmatpush1.msra.mxu0 0.0
        %1106 = vmatprep.subr.mxu0 0.0
        %1107 = vmatpush1.msra.mxu0 0.0
        %1108 = vmatprep.subr.mxu0 0.0
        %1109 = vmatpush1.msra.mxu0 0.0
        %1110 = vmatprep.subr.mxu0 0.0
        %1111 = vmatpush1.msra.mxu0 0.0
        %1112 = vmatprep.subr.mxu0 0.0
        %1113 = vmatpush1.msra.mxu0 0.0
        %1114 = vmatprep.subr.mxu0 0.0
        %1115 = vmatpush1.msra.mxu0 0.0
        %1116 = vmatprep.subr.mxu0 0.0
        %1117 = vmatpush1.msra.mxu0 0.0
        %1118 = vmatprep.subr.mxu0 0.0
        %1119 = vmatpush1.msra.mxu0 0.0
        %1120 = vmatprep.subr.mxu0 0.0
        %1121 = vmatpush1.msra.mxu0 0.0
        %1122 = vmatprep.subr.mxu0 0.0
        %1123 = vmatpush1.msra.mxu0 0.0
        %1124 = vmatprep.subr.mxu0 0.0
        %1125 = vmatpush1.msra.mxu0 0.0
        %1126 = vmatprep.subr.mxu0 0.0
        %1127 = vmatpush1.msra.mxu0 0.0
        %1128 = vmatprep.subr.mxu0 0.0
        %1129 = vmatpush1.msra.mxu0 0.0
        %1130 = vmatprep.subr.mxu0 0.0
        %1131 = vmatpush1.msra.mxu0 0.0
        %1132 = vmatprep.subr.mxu0 0.0
        %1133 = vmatpush1.msra.mxu0 0.0
        %1134 = vmatprep.subr.mxu0 0.0
        %1135 = vmatpush1.msra.mxu0 0.0
        %1136 = vmatprep.subr.mxu0 0.0
        %1137 = vmatpush1.msra.mxu0 0.0
        %1138 = vmatprep.subr.mxu0 0.0
        %1139 = vmatpush1.msra.mxu0 0.0
        %1140 = vmatprep.subr.mxu0 0.0
        %1141 = vmatpush1.msra.mxu0 0.0
        %1142 = vmatprep.subr.mxu0 0.0
        %1143 = vmatpush1.msra.mxu0 0.0
        %1144 = vmatprep.subr.mxu0 0.0
        %1145 = vmatpush1.msra.mxu0 0.0
        %1146 = vmatprep.mubr.f32.mxu0 0.0
        %1147 = vmatmul.mubr.f32.gmra.mrb[0].mxu0 %v1080
        %v1148 = vpop.f32.mrb[0].mxu0
        %v1149 = vadd.f32 0.0, %v1148
        %v1150 = vpop.f32.mrb[0].mxu0
        %1151 = vdwg.mxu0
        %1153 = vrot.lane.b32.xlu0 %v997, 8
        %v1154 = vpop.permute.xlu0 %1153
        %1157 = vrot.lane.b32.xlu0 %v1073, 16
        %v1158 = vpop.permute.xlu0 %1157
        %1161 = vrot.lane.b32.xlu0 %v1149, 24
        %v1162 = vpop.permute.xlu0 %1161
        %v1164 = vsel %vm507, %v921, %v1154
        %v1165 = vsel %vm415, %v1164, %v1158
        %vm1166 = vcmask 195584
        %v1167 = vsel %vm1166, %v1165, %v1162
        %v1169 = vsel %vm322, %v1167, 0
        %1171 = vmatprep.subr.mxu0 0.0
        %1172 = vmatpush1.msra.mxu0 %v489
        %1173 = vmatprep.subr.mxu0 0.0
        %1174 = vmatpush1.msra.mxu0 %v490
        %1175 = vmatprep.subr.mxu0 0.0
        %1176 = vmatpush1.msra.mxu0 %v491
        %1177 = vmatprep.subr.mxu0 0.0
        %1178 = vmatpush1.msra.mxu0 %v492
        %1179 = vmatprep.subr.mxu0 0.0
        %1180 = vmatpush1.msra.mxu0 0.0
        %1181 = vmatprep.subr.mxu0 0.0
        %1182 = vmatpush1.msra.mxu0 0.0
        %1183 = vmatprep.subr.mxu0 0.0
        %1184 = vmatpush1.msra.mxu0 0.0
        %1185 = vmatprep.subr.mxu0 0.0
        %1186 = vmatpush1.msra.mxu0 0.0
        %1187 = vmatprep.subr.mxu0 0.0
        %1188 = vmatpush1.msra.mxu0 0.0
        %1189 = vmatprep.subr.mxu0 0.0
        %1190 = vmatpush1.msra.mxu0 0.0
        %1191 = vmatprep.subr.mxu0 0.0
        %1192 = vmatpush1.msra.mxu0 0.0
        %1193 = vmatprep.subr.mxu0 0.0
        %1194 = vmatpush1.msra.mxu0 0.0
        %1195 = vmatprep.subr.mxu0 0.0
        %1196 = vmatpush1.msra.mxu0 0.0
        %1197 = vmatprep.subr.mxu0 0.0
        %1198 = vmatpush1.msra.mxu0 0.0
        %1199 = vmatprep.subr.mxu0 0.0
        %1200 = vmatpush1.msra.mxu0 0.0
        %1201 = vmatprep.subr.mxu0 0.0
        %1202 = vmatpush1.msra.mxu0 0.0
        %1203 = vmatprep.subr.mxu0 0.0
        %1204 = vmatpush1.msra.mxu0 0.0
        %1205 = vmatprep.subr.mxu0 0.0
        %1206 = vmatpush1.msra.mxu0 0.0
        %1207 = vmatprep.subr.mxu0 0.0
        %1208 = vmatpush1.msra.mxu0 0.0
        %1209 = vmatprep.subr.mxu0 0.0
        %1210 = vmatpush1.msra.mxu0 0.0
        %1211 = vmatprep.subr.mxu0 0.0
        %1212 = vmatpush1.msra.mxu0 0.0
        %1213 = vmatprep.subr.mxu0 0.0
        %1214 = vmatpush1.msra.mxu0 0.0
        %1215 = vmatprep.subr.mxu0 0.0
        %1216 = vmatpush1.msra.mxu0 0.0
        %1217 = vmatprep.subr.mxu0 0.0
        %1218 = vmatpush1.msra.mxu0 0.0
        %1219 = vmatprep.subr.mxu0 0.0
        %1220 = vmatpush1.msra.mxu0 0.0
        %1221 = vmatprep.subr.mxu0 0.0
        %1222 = vmatpush1.msra.mxu0 0.0
        %1223 = vmatprep.subr.mxu0 0.0
        %1224 = vmatpush1.msra.mxu0 0.0
        %1225 = vmatprep.subr.mxu0 0.0
        %1226 = vmatpush1.msra.mxu0 0.0
        %1227 = vmatprep.subr.mxu0 0.0
        %1228 = vmatpush1.msra.mxu0 0.0
        %1229 = vmatprep.subr.mxu0 0.0
        %1230 = vmatpush1.msra.mxu0 0.0
        %1231 = vmatprep.subr.mxu0 0.0
        %1232 = vmatpush1.msra.mxu0 0.0
        %1233 = vmatprep.subr.mxu0 0.0
        %1234 = vmatpush1.msra.mxu0 0.0
        %1235 = vmatprep.mubr.f32.mxu0 0.0
        %1236 = vmatmul.mubr.f32.gmra.mrb[0].mxu0 %v1169
        %v1237 = vpop.f32.mrb[0].mxu0
        %v1238 = vadd.f32 0.0, %v1237
        %v1239 = vpop.f32.mrb[0].mxu0
        %1240 = vdwg.mxu0
        %v1241 = vadd.f32 %v318, %v1238
        %v1242 = vmul.f32 %v1241, %v1241
        %v1243 = vsel %vm322, %v1242, 0.0
        %1244 = vadd.xlane.f32.xlu0 %v1243
        %v1245 = vpop.xlane.xlu0 %1244
        %v1246 = vmul.f32 %v1245, %v326
        %v1247 = vadd.f32 %v1246, 1e-06
        %v1248 = vrsqrt.pop %v1247
        %v1249 = vmul.f32 %v1241, %v1248
        %v1250 = vlaneseq
        %v1251 = vshrl.u32 %v1250, 7
        %v1252 = vsub.s32 1, %v1251
        %v1253 = vrot.slane %v320, %v1252
        %v1254 = vmul.f32 %v1249, %v1253
        %v1255 = vld [vmem:[%s3 + $0x10] sm:$0xff]
        %v1256 = vld [vmem:[%s3 + $0x38] sm:$0xff]
        %v1257 = vld [vmem:[%s3 + $0x60] sm:$0xff]
        %v1258 = vld [vmem:[%s3 + $0x88] sm:$0xff]
        %v1260 = vsel %vm322, %v1254, 0
        %1262 = vmatprep.subr.mxu0 0.0
        %1263 = vmatpush1.msra.mxu0 %v1255
        %1264 = vmatprep.subr.mxu0 0.0
        %1265 = vmatpush1.msra.mxu0 %v1256
        %1266 = vmatprep.subr.mxu0 0.0
        %1267 = vmatpush1.msra.mxu0 %v1257
        %1268 = vmatprep.subr.mxu0 0.0
        %1269 = vmatpush1.msra.mxu0 %v1258
        %1270 = vmatprep.subr.mxu0 0.0
        %1271 = vmatpush1.msra.mxu0 0.0
        %1272 = vmatprep.subr.mxu0 0.0
        %1273 = vmatpush1.msra.mxu0 0.0
        %1274 = vmatprep.subr.mxu0 0.0
        %1275 = vmatpush1.msra.mxu0 0.0
        %1276 = vmatprep.subr.mxu0 0.0
        %1277 = vmatpush1.msra.mxu0 0.0
        %1278 = vmatprep.subr.mxu0 0.0
        %1279 = vmatpush1.msra.mxu0 0.0
        %1280 = vmatprep.subr.mxu0 0.0
        %1281 = vmatpush1.msra.mxu0 0.0
        %1282 = vmatprep.subr.mxu0 0.0
        %1283 = vmatpush1.msra.mxu0 0.0
        %1284 = vmatprep.subr.mxu0 0.0
        %1285 = vmatpush1.msra.mxu0 0.0
        %1286 = vmatprep.subr.mxu0 0.0
        %1287 = vmatpush1.msra.mxu0 0.0
        %1288 = vmatprep.subr.mxu0 0.0
        %1289 = vmatpush1.msra.mxu0 0.0
        %1290 = vmatprep.subr.mxu0 0.0
        %1291 = vmatpush1.msra.mxu0 0.0
        %1292 = vmatprep.subr.mxu0 0.0
        %1293 = vmatpush1.msra.mxu0 0.0
        %1294 = vmatprep.subr.mxu0 0.0
        %1295 = vmatpush1.msra.mxu0 0.0
        %1296 = vmatprep.subr.mxu0 0.0
        %1297 = vmatpush1.msra.mxu0 0.0
        %1298 = vmatprep.subr.mxu0 0.0
        %1299 = vmatpush1.msra.mxu0 0.0
        %1300 = vmatprep.subr.mxu0 0.0
        %1301 = vmatpush1.msra.mxu0 0.0
        %1302 = vmatprep.subr.mxu0 0.0
        %1303 = vmatpush1.msra.mxu0 0.0
        %1304 = vmatprep.subr.mxu0 0.0
        %1305 = vmatpush1.msra.mxu0 0.0
        %1306 = vmatprep.subr.mxu0 0.0
        %1307 = vmatpush1.msra.mxu0 0.0
        %1308 = vmatprep.subr.mxu0 0.0
        %1309 = vmatpush1.msra.mxu0 0.0
        %1310 = vmatprep.subr.mxu0 0.0
        %1311 = vmatpush1.msra.mxu0 0.0
        %1312 = vmatprep.subr.mxu0 0.0
        %1313 = vmatpush1.msra.mxu0 0.0
        %1314 = vmatprep.subr.mxu0 0.0
        %1315 = vmatpush1.msra.mxu0 0.0
        %1316 = vmatprep.subr.mxu0 0.0
        %1317 = vmatpush1.msra.mxu0 0.0
        %1318 = vmatprep.subr.mxu0 0.0
        %1319 = vmatpush1.msra.mxu0 0.0
        %1320 = vmatprep.subr.mxu0 0.0
        %1321 = vmatpush1.msra.mxu0 0.0
        %1322 = vmatprep.subr.mxu0 0.0
        %1323 = vmatpush1.msra.mxu0 0.0
        %1324 = vmatprep.subr.mxu0 0.0
        %1325 = vmatpush1.msra.mxu0 0.0
        %1326 = vmatprep.mubr.f32.mxu0 0.0
        %1327 = vmatmul.mubr.f32.gmra.mrb[0].mxu0 %v1260
        %v1328 = vpop.f32.mrb[0].mxu0
        %v1329 = vadd.f32 0.0, %v1328
        %v1330 = vpop.f32.mrb[0].mxu0
        %1331 = vdwg.mxu0
        %v1332 = vld [vmem:[%s3 + $0x18] sm:$0xff]
        %v1333 = vld [vmem:[%s3 + $0x40] sm:$0xff]
        %v1334 = vld [vmem:[%s3 + $0x68] sm:$0xff]
        %v1335 = vld [vmem:[%s3 + $0x90] sm:$0xff]
        %1337 = vrot.lane.b32.xlu0 %v1329, 120
        %v1338 = vpop.permute.xlu0 %1337
        %1339 = vrot.lane.b32.xlu0 %v1329, 112
        %v1340 = vpop.permute.xlu0 %1339
        %1341 = vrot.lane.b32.xlu0 %v1329, 104
        %v1342 = vpop.permute.xlu0 %1341
        %1343 = vrot.lane.b32.xlu0 %v1329, 96
        %v1344 = vpop.permute.xlu0 %1343
        %v1345 = vsel %vm507, %v1329, 0
        %v1347 = vsel %vm507, %v1344, 0
        %1349 = vmatprep.subr.mxu0 0.0
        %1350 = vmatpush1.xpose.msra.mxu0 %v1347
        %1351 = vmatprep.subr.mxu0 0.0
        %1352 = vmatpush1.xpose.msra.mxu0 0.0
        %1353 = vmatprep.subr.mxu0 0.0
        %1354 = vmatpush1.xpose.msra.mxu0 0.0
        %1355 = vmatprep.subr.mxu0 0.0
        %1356 = vmatpush1.xpose.msra.mxu0 0.0
        %1357 = vmatprep.subr.mxu0 0.0
        %1358 = vmatpush1.xpose.msra.mxu0 0.0
        %1359 = vmatprep.subr.mxu0 0.0
        %1360 = vmatpush1.xpose.msra.mxu0 0.0
        %1361 = vmatprep.subr.mxu0 0.0
        %1362 = vmatpush1.xpose.msra.mxu0 0.0
        %1363 = vmatprep.subr.mxu0 0.0
        %1364 = vmatpush1.xpose.msra.mxu0 0.0
        %1365 = vmatprep.subr.mxu0 0.0
        %1366 = vmatpush1.xpose.msra.mxu0 0.0
        %1367 = vmatprep.subr.mxu0 0.0
        %1368 = vmatpush1.xpose.msra.mxu0 0.0
        %1369 = vmatprep.subr.mxu0 0.0
        %1370 = vmatpush1.xpose.msra.mxu0 0.0
        %1371 = vmatprep.subr.mxu0 0.0
        %1372 = vmatpush1.xpose.msra.mxu0 0.0
        %1373 = vmatprep.subr.mxu0 0.0
        %1374 = vmatpush1.xpose.msra.mxu0 0.0
        %1375 = vmatprep.subr.mxu0 0.0
        %1376 = vmatpush1.xpose.msra.mxu0 0.0
        %1377 = vmatprep.subr.mxu0 0.0
        %1378 = vmatpush1.xpose.msra.mxu0 0.0
        %1379 = vmatprep.subr.mxu0 0.0
        %1380 = vmatpush1.xpose.msra.mxu0 0.0
        %1381 = vmatprep.subr.mxu0 0.0
        %1382 = vmatpush1.xpose.msra.mxu0 0.0
        %1383 = vmatprep.subr.mxu0 0.0
        %1384 = vmatpush1.xpose.msra.mxu0 0.0
        %1385 = vmatprep.subr.mxu0 0.0
        %1386 = vmatpush1.xpose.msra.mxu0 0.0
        %1387 = vmatprep.subr.mxu0 0.0
        %1388 = vmatpush1.xpose.msra.mxu0 0.0
        %1389 = vmatprep.subr.mxu0 0.0
        %1390 = vmatpush1.xpose.msra.mxu0 0.0
        %1391 = vmatprep.subr.mxu0 0.0
        %1392 = vmatpush1.xpose.msra.mxu0 0.0
        %1393 = vmatprep.subr.mxu0 0.0
        %1394 = vmatpush1.xpose.msra.mxu0 0.0
        %1395 = vmatprep.subr.mxu0 0.0
        %1396 = vmatpush1.xpose.msra.mxu0 0.0
        %1397 = vmatprep.subr.mxu0 0.0
        %1398 = vmatpush1.xpose.msra.mxu0 0.0
        %1399 = vmatprep.subr.mxu0 0.0
        %1400 = vmatpush1.xpose.msra.mxu0 0.0
        %1401 = vmatprep.subr.mxu0 0.0
        %1402 = vmatpush1.xpose.msra.mxu0 0.0
        %1403 = vmatprep.subr.mxu0 0.0
        %1404 = vmatpush1.xpose.msra.mxu0 0.0
        %1405 = vmatprep.subr.mxu0 0.0
        %1406 = vmatpush1.xpose.msra.mxu0 0.0
        %1407 = vmatprep.subr.mxu0 0.0
        %1408 = vmatpush1.xpose.msra.mxu0 0.0
        %1409 = vmatprep.subr.mxu0 0.0
        %1410 = vmatpush1.xpose.msra.mxu0 0.0
        %1411 = vmatprep.subr.mxu0 0.0
        %1412 = vmatpush1.xpose.msra.mxu0 0.0
        %1413 = vmatprep.mubr.f32.mxu0 0.0
        %1414 = vmatmul.mubr.f32.gmra.mrb[0].mxu0 %v1345
        %v1415 = vpop.f32.mrb[0].mxu0
        %v1416 = vadd.f32 0.0, %v1415
        %v1417 = vpop.f32.mrb[0].mxu0
        %1418 = vdwg.mxu0
        %1419 = vrot.lane.b32.xlu0 %v1338, 96
        %v1420 = vpop.permute.xlu0 %1419
        %v1421 = vsel %vm507, %v1338, 0
        %v1423 = vsel %vm507, %v1420, 0
        %1425 = vmatprep.subr.mxu0 0.0
        %1426 = vmatpush1.xpose.msra.mxu0 %v1423
        %1427 = vmatprep.subr.mxu0 0.0
        %1428 = vmatpush1.xpose.msra.mxu0 0.0
        %1429 = vmatprep.subr.mxu0 0.0
        %1430 = vmatpush1.xpose.msra.mxu0 0.0
        %1431 = vmatprep.subr.mxu0 0.0
        %1432 = vmatpush1.xpose.msra.mxu0 0.0
        %1433 = vmatprep.subr.mxu0 0.0
        %1434 = vmatpush1.xpose.msra.mxu0 0.0
        %1435 = vmatprep.subr.mxu0 0.0
        %1436 = vmatpush1.xpose.msra.mxu0 0.0
        %1437 = vmatprep.subr.mxu0 0.0
        %1438 = vmatpush1.xpose.msra.mxu0 0.0
        %1439 = vmatprep.subr.mxu0 0.0
        %1440 = vmatpush1.xpose.msra.mxu0 0.0
        %1441 = vmatprep.subr.mxu0 0.0
        %1442 = vmatpush1.xpose.msra.mxu0 0.0
        %1443 = vmatprep.subr.mxu0 0.0
        %1444 = vmatpush1.xpose.msra.mxu0 0.0
        %1445 = vmatprep.subr.mxu0 0.0
        %1446 = vmatpush1.xpose.msra.mxu0 0.0
        %1447 = vmatprep.subr.mxu0 0.0
        %1448 = vmatpush1.xpose.msra.mxu0 0.0
        %1449 = vmatprep.subr.mxu0 0.0
        %1450 = vmatpush1.xpose.msra.mxu0 0.0
        %1451 = vmatprep.subr.mxu0 0.0
        %1452 = vmatpush1.xpose.msra.mxu0 0.0
        %1453 = vmatprep.subr.mxu0 0.0
        %1454 = vmatpush1.xpose.msra.mxu0 0.0
        %1455 = vmatprep.subr.mxu0 0.0
        %1456 = vmatpush1.xpose.msra.mxu0 0.0
        %1457 = vmatprep.subr.mxu0 0.0
        %1458 = vmatpush1.xpose.msra.mxu0 0.0
        %1459 = vmatprep.subr.mxu0 0.0
        %1460 = vmatpush1.xpose.msra.mxu0 0.0
        %1461 = vmatprep.subr.mxu0 0.0
        %1462 = vmatpush1.xpose.msra.mxu0 0.0
        %1463 = vmatprep.subr.mxu0 0.0
        %1464 = vmatpush1.xpose.msra.mxu0 0.0
        %1465 = vmatprep.subr.mxu0 0.0
        %1466 = vmatpush1.xpose.msra.mxu0 0.0
        %1467 = vmatprep.subr.mxu0 0.0
        %1468 = vmatpush1.xpose.msra.mxu0 0.0
        %1469 = vmatprep.subr.mxu0 0.0
        %1470 = vmatpush1.xpose.msra.mxu0 0.0
        %1471 = vmatprep.subr.mxu0 0.0
        %1472 = vmatpush1.xpose.msra.mxu0 0.0
        %1473 = vmatprep.subr.mxu0 0.0
        %1474 = vmatpush1.xpose.msra.mxu0 0.0
        %1475 = vmatprep.subr.mxu0 0.0
        %1476 = vmatpush1.xpose.msra.mxu0 0.0
        %1477 = vmatprep.subr.mxu0 0.0
        %1478 = vmatpush1.xpose.msra.mxu0 0.0
        %1479 = vmatprep.subr.mxu0 0.0
        %1480 = vmatpush1.xpose.msra.mxu0 0.0
        %1481 = vmatprep.subr.mxu0 0.0
        %1482 = vmatpush1.xpose.msra.mxu0 0.0
        %1483 = vmatprep.subr.mxu0 0.0
        %1484 = vmatpush1.xpose.msra.mxu0 0.0
        %1485 = vmatprep.subr.mxu0 0.0
        %1486 = vmatpush1.xpose.msra.mxu0 0.0
        %1487 = vmatprep.subr.mxu0 0.0
        %1488 = vmatpush1.xpose.msra.mxu0 0.0
        %1489 = vmatprep.mubr.f32.mxu0 0.0
        %1490 = vmatmul.mubr.f32.gmra.mrb[0].mxu0 %v1421
        %v1491 = vpop.f32.mrb[0].mxu0
        %v1492 = vadd.f32 0.0, %v1491
        %v1493 = vpop.f32.mrb[0].mxu0
        %1494 = vdwg.mxu0
        %1495 = vrot.lane.b32.xlu0 %v1340, 96
        %v1496 = vpop.permute.xlu0 %1495
        %v1497 = vsel %vm507, %v1340, 0
        %v1499 = vsel %vm507, %v1496, 0
        %1501 = vmatprep.subr.mxu0 0.0
        %1502 = vmatpush1.xpose.msra.mxu0 %v1499
        %1503 = vmatprep.subr.mxu0 0.0
        %1504 = vmatpush1.xpose.msra.mxu0 0.0
        %1505 = vmatprep.subr.mxu0 0.0
        %1506 = vmatpush1.xpose.msra.mxu0 0.0
        %1507 = vmatprep.subr.mxu0 0.0
        %1508 = vmatpush1.xpose.msra.mxu0 0.0
        %1509 = vmatprep.subr.mxu0 0.0
        %1510 = vmatpush1.xpose.msra.mxu0 0.0
        %1511 = vmatprep.subr.mxu0 0.0
        %1512 = vmatpush1.xpose.msra.mxu0 0.0
        %1513 = vmatprep.subr.mxu0 0.0
        %1514 = vmatpush1.xpose.msra.mxu0 0.0
        %1515 = vmatprep.subr.mxu0 0.0
        %1516 = vmatpush1.xpose.msra.mxu0 0.0
        %1517 = vmatprep.subr.mxu0 0.0
        %1518 = vmatpush1.xpose.msra.mxu0 0.0
        %1519 = vmatprep.subr.mxu0 0.0
        %1520 = vmatpush1.xpose.msra.mxu0 0.0
        %1521 = vmatprep.subr.mxu0 0.0
        %1522 = vmatpush1.xpose.msra.mxu0 0.0
        %1523 = vmatprep.subr.mxu0 0.0
        %1524 = vmatpush1.xpose.msra.mxu0 0.0
        %1525 = vmatprep.subr.mxu0 0.0
        %1526 = vmatpush1.xpose.msra.mxu0 0.0
        %1527 = vmatprep.subr.mxu0 0.0
        %1528 = vmatpush1.xpose.msra.mxu0 0.0
        %1529 = vmatprep.subr.mxu0 0.0
        %1530 = vmatpush1.xpose.msra.mxu0 0.0
        %1531 = vmatprep.subr.mxu0 0.0
        %1532 = vmatpush1.xpose.msra.mxu0 0.0
        %1533 = vmatprep.subr.mxu0 0.0
        %1534 = vmatpush1.xpose.msra.mxu0 0.0
        %1535 = vmatprep.subr.mxu0 0.0
        %1536 = vmatpush1.xpose.msra.mxu0 0.0
        %1537 = vmatprep.subr.mxu0 0.0
        %1538 = vmatpush1.xpose.msra.mxu0 0.0
        %1539 = vmatprep.subr.mxu0 0.0
        %1540 = vmatpush1.xpose.msra.mxu0 0.0
        %1541 = vmatprep.subr.mxu0 0.0
        %1542 = vmatpush1.xpose.msra.mxu0 0.0
        %1543 = vmatprep.subr.mxu0 0.0
        %1544 = vmatpush1.xpose.msra.mxu0 0.0
        %1545 = vmatprep.subr.mxu0 0.0
        %1546 = vmatpush1.xpose.msra.mxu0 0.0
        %1547 = vmatprep.subr.mxu0 0.0
        %1548 = vmatpush1.xpose.msra.mxu0 0.0
        %1549 = vmatprep.subr.mxu0 0.0
        %1550 = vmatpush1.xpose.msra.mxu0 0.0
        %1551 = vmatprep.subr.mxu0 0.0
        %1552 = vmatpush1.xpose.msra.mxu0 0.0
        %1553 = vmatprep.subr.mxu0 0.0
        %1554 = vmatpush1.xpose.msra.mxu0 0.0
        %1555 = vmatprep.subr.mxu0 0.0
        %1556 = vmatpush1.xpose.msra.mxu0 0.0
        %1557 = vmatprep.subr.mxu0 0.0
        %1558 = vmatpush1.xpose.msra.mxu0 0.0
        %1559 = vmatprep.subr.mxu0 0.0
        %1560 = vmatpush1.xpose.msra.mxu0 0.0
        %1561 = vmatprep.subr.mxu0 0.0
        %1562 = vmatpush1.xpose.msra.mxu0 0.0
        %1563 = vmatprep.subr.mxu0 0.0
        %1564 = vmatpush1.xpose.msra.mxu0 0.0
        %1565 = vmatprep.mubr.f32.mxu0 0.0
        %1566 = vmatmul.mubr.f32.gmra.mrb[0].mxu0 %v1497
        %v1567 = vpop.f32.mrb[0].mxu0
        %v1568 = vadd.f32 0.0, %v1567
        %v1569 = vpop.f32.mrb[0].mxu0
        %1570 = vdwg.mxu0
        %1571 = vrot.lane.b32.xlu0 %v1342, 96
        %v1572 = vpop.permute.xlu0 %1571
        %v1573 = vsel %vm507, %v1342, 0
        %v1575 = vsel %vm507, %v1572, 0
        %1577 = vmatprep.subr.mxu0 0.0
        %1578 = vmatpush1.xpose.msra.mxu0 %v1575
        %1579 = vmatprep.subr.mxu0 0.0
        %1580 = vmatpush1.xpose.msra.mxu0 0.0
        %1581 = vmatprep.subr.mxu0 0.0
        %1582 = vmatpush1.xpose.msra.mxu0 0.0
        %1583 = vmatprep.subr.mxu0 0.0
        %1584 = vmatpush1.xpose.msra.mxu0 0.0
        %1585 = vmatprep.subr.mxu0 0.0
        %1586 = vmatpush1.xpose.msra.mxu0 0.0
        %1587 = vmatprep.subr.mxu0 0.0
        %1588 = vmatpush1.xpose.msra.mxu0 0.0
        %1589 = vmatprep.subr.mxu0 0.0
        %1590 = vmatpush1.xpose.msra.mxu0 0.0
        %1591 = vmatprep.subr.mxu0 0.0
        %1592 = vmatpush1.xpose.msra.mxu0 0.0
        %1593 = vmatprep.subr.mxu0 0.0
        %1594 = vmatpush1.xpose.msra.mxu0 0.0
        %1595 = vmatprep.subr.mxu0 0.0
        %1596 = vmatpush1.xpose.msra.mxu0 0.0
        %1597 = vmatprep.subr.mxu0 0.0
        %1598 = vmatpush1.xpose.msra.mxu0 0.0
        %1599 = vmatprep.subr.mxu0 0.0
        %1600 = vmatpush1.xpose.msra.mxu0 0.0
        %1601 = vmatprep.subr.mxu0 0.0
        %1602 = vmatpush1.xpose.msra.mxu0 0.0
        %1603 = vmatprep.subr.mxu0 0.0
        %1604 = vmatpush1.xpose.msra.mxu0 0.0
        %1605 = vmatprep.subr.mxu0 0.0
        %1606 = vmatpush1.xpose.msra.mxu0 0.0
        %1607 = vmatprep.subr.mxu0 0.0
        %1608 = vmatpush1.xpose.msra.mxu0 0.0
        %1609 = vmatprep.subr.mxu0 0.0
        %1610 = vmatpush1.xpose.msra.mxu0 0.0
        %1611 = vmatprep.subr.mxu0 0.0
        %1612 = vmatpush1.xpose.msra.mxu0 0.0
        %1613 = vmatprep.subr.mxu0 0.0
        %1614 = vmatpush1.xpose.msra.mxu0 0.0
        %1615 = vmatprep.subr.mxu0 0.0
        %1616 = vmatpush1.xpose.msra.mxu0 0.0
        %1617 = vmatprep.subr.mxu0 0.0
        %1618 = vmatpush1.xpose.msra.mxu0 0.0
        %1619 = vmatprep.subr.mxu0 0.0
        %1620 = vmatpush1.xpose.msra.mxu0 0.0
        %1621 = vmatprep.subr.mxu0 0.0
        %1622 = vmatpush1.xpose.msra.mxu0 0.0
        %1623 = vmatprep.subr.mxu0 0.0
        %1624 = vmatpush1.xpose.msra.mxu0 0.0
        %1625 = vmatprep.subr.mxu0 0.0
        %1626 = vmatpush1.xpose.msra.mxu0 0.0
        %1627 = vmatprep.subr.mxu0 0.0
        %1628 = vmatpush1.xpose.msra.mxu0 0.0
        %1629 = vmatprep.subr.mxu0 0.0
        %1630 = vmatpush1.xpose.msra.mxu0 0.0
        %1631 = vmatprep.subr.mxu0 0.0
        %1632 = vmatpush1.xpose.msra.mxu0 0.0
        %1633 = vmatprep.subr.mxu0 0.0
        %1634 = vmatpush1.xpose.msra.mxu0 0.0
        %1635 = vmatprep.subr.mxu0 0.0
        %1636 = vmatpush1.xpose.msra.mxu0 0.0
        %1637 = vmatprep.subr.mxu0 0.0
        %1638 = vmatpush1.xpose.msra.mxu0 0.0
        %1639 = vmatprep.subr.mxu0 0.0
        %1640 = vmatpush1.xpose.msra.mxu0 0.0
        %1641 = vmatprep.mubr.f32.mxu0 0.0
        %1642 = vmatmul.mubr.f32.gmra.mrb[0].mxu0 %v1573
        %v1643 = vpop.f32.mrb[0].mxu0
        %v1644 = vadd.f32 0.0, %v1643
        %v1645 = vpop.f32.mrb[0].mxu0
        %1646 = vdwg.mxu0
        %v1647 = vsel %vm507, %v1416, -inf
        %1648 = vmax.xlane.f32.xlu0 %v1647
        %v1649 = vpop.xlane.xlu0 %1648
        %v1650 = vsel %vm507, %v1492, -inf
        %1651 = vmax.xlane.f32.xlu0 %v1650
        %v1652 = vpop.xlane.xlu0 %1651
        %v1653 = vsel %vm507, %v1568, -inf
        %1654 = vmax.xlane.f32.xlu0 %v1653
        %v1655 = vpop.xlane.xlu0 %1654
        %v1656 = vsel %vm507, %v1644, -inf
        %1657 = vmax.xlane.f32.xlu0 %v1656
        %v1658 = vpop.xlane.xlu0 %1657
        %v1659 = vsub.f32 %v1416, %v1649
        %v1660 = vsub.f32 %v1492, %v1652
        %v1661 = vsub.f32 %v1568, %v1655
        %v1662 = vsub.f32 %v1644, %v1658
        %v1663 = vmul.f32 %v1659, 1.442695
        %v1664 = vpow.pop %v1663
        %v1665 = vmul.f32 %v1660, 1.442695
        %v1666 = vpow.pop %v1665
        %v1667 = vmul.f32 %v1661, 1.442695
        %v1668 = vpow.pop %v1667
        %v1669 = vmul.f32 %v1662, 1.442695
        %v1670 = vpow.pop %v1669
        %v1671 = vsel %vm507, %v1664, 0.0
        %1672 = vadd.xlane.f32.xlu0 %v1671
        %v1673 = vpop.xlane.xlu0 %1672
        %v1674 = vsel %vm507, %v1666, 0.0
        %1675 = vadd.xlane.f32.xlu0 %v1674
        %v1676 = vpop.xlane.xlu0 %1675
        %v1677 = vsel %vm507, %v1668, 0.0
        %1678 = vadd.xlane.f32.xlu0 %v1677
        %v1679 = vpop.xlane.xlu0 %1678
        %v1680 = vsel %vm507, %v1670, 0.0
        %1681 = vadd.xlane.f32.xlu0 %v1680
        %v1682 = vpop.xlane.xlu0 %1681
        %v1683 = vrcp.pop %v1673
        %v1684 = vrcp.pop %v1676
        %v1685 = vrcp.pop %v1679
        %v1686 = vrcp.pop %v1682
        %v1687 = vmul.f32 %v1664, %v1683
        %v1688 = vmul.f32 %v1666, %v1684
        %v1689 = vmul.f32 %v1668, %v1685
        %v1690 = vmul.f32 %v1670, %v1686
        %1691 = vrot.lane.b32.xlu0 %v1329, 64
        %v1692 = vpop.permute.xlu0 %1691
        %v1695 = vsel %vm507, %v1687, 0
        %1697 = vmatprep.subr.mxu0 0.0
        %1698 = vmatpush1.msra.mxu0 %v1692
        %1699 = vmatprep.subr.mxu0 0.0
        %1700 = vmatpush1.msra.mxu0 0.0
        %1701 = vmatprep.subr.mxu0 0.0
        %1702 = vmatpush1.msra.mxu0 0.0
        %1703 = vmatprep.subr.mxu0 0.0
        %1704 = vmatpush1.msra.mxu0 0.0
        %1705 = vmatprep.subr.mxu0 0.0
        %1706 = vmatpush1.msra.mxu0 0.0
        %1707 = vmatprep.subr.mxu0 0.0
        %1708 = vmatpush1.msra.mxu0 0.0
        %1709 = vmatprep.subr.mxu0 0.0
        %1710 = vmatpush1.msra.mxu0 0.0
        %1711 = vmatprep.subr.mxu0 0.0
        %1712 = vmatpush1.msra.mxu0 0.0
        %1713 = vmatprep.subr.mxu0 0.0
        %1714 = vmatpush1.msra.mxu0 0.0
        %1715 = vmatprep.subr.mxu0 0.0
        %1716 = vmatpush1.msra.mxu0 0.0
        %1717 = vmatprep.subr.mxu0 0.0
        %1718 = vmatpush1.msra.mxu0 0.0
        %1719 = vmatprep.subr.mxu0 0.0
        %1720 = vmatpush1.msra.mxu0 0.0
        %1721 = vmatprep.subr.mxu0 0.0
        %1722 = vmatpush1.msra.mxu0 0.0
        %1723 = vmatprep.subr.mxu0 0.0
        %1724 = vmatpush1.msra.mxu0 0.0
        %1725 = vmatprep.subr.mxu0 0.0
        %1726 = vmatpush1.msra.mxu0 0.0
        %1727 = vmatprep.subr.mxu0 0.0
        %1728 = vmatpush1.msra.mxu0 0.0
        %1729 = vmatprep.subr.mxu0 0.0
        %1730 = vmatpush1.msra.mxu0 0.0
        %1731 = vmatprep.subr.mxu0 0.0
        %1732 = vmatpush1.msra.mxu0 0.0
        %1733 = vmatprep.subr.mxu0 0.0
        %1734 = vmatpush1.msra.mxu0 0.0
        %1735 = vmatprep.subr.mxu0 0.0
        %1736 = vmatpush1.msra.mxu0 0.0
        %1737 = vmatprep.subr.mxu0 0.0
        %1738 = vmatpush1.msra.mxu0 0.0
        %1739 = vmatprep.subr.mxu0 0.0
        %1740 = vmatpush1.msra.mxu0 0.0
        %1741 = vmatprep.subr.mxu0 0.0
        %1742 = vmatpush1.msra.mxu0 0.0
        %1743 = vmatprep.subr.mxu0 0.0
        %1744 = vmatpush1.msra.mxu0 0.0
        %1745 = vmatprep.subr.mxu0 0.0
        %1746 = vmatpush1.msra.mxu0 0.0
        %1747 = vmatprep.subr.mxu0 0.0
        %1748 = vmatpush1.msra.mxu0 0.0
        %1749 = vmatprep.subr.mxu0 0.0
        %1750 = vmatpush1.msra.mxu0 0.0
        %1751 = vmatprep.subr.mxu0 0.0
        %1752 = vmatpush1.msra.mxu0 0.0
        %1753 = vmatprep.subr.mxu0 0.0
        %1754 = vmatpush1.msra.mxu0 0.0
        %1755 = vmatprep.subr.mxu0 0.0
        %1756 = vmatpush1.msra.mxu0 0.0
        %1757 = vmatprep.subr.mxu0 0.0
        %1758 = vmatpush1.msra.mxu0 0.0
        %1759 = vmatprep.subr.mxu0 0.0
        %1760 = vmatpush1.msra.mxu0 0.0
        %1761 = vmatprep.mubr.f32.mxu0 0.0
        %1762 = vmatmul.mubr.f32.gmra.mrb[0].mxu0 %v1695
        %v1763 = vpop.f32.mrb[0].mxu0
        %v1764 = vadd.f32 0.0, %v1763
        %v1765 = vpop.f32.mrb[0].mxu0
        %1766 = vdwg.mxu0
        %1767 = vrot.lane.b32.xlu0 %v1338, 64
        %v1768 = vpop.permute.xlu0 %1767
        %v1771 = vsel %vm507, %v1688, 0
        %1773 = vmatprep.subr.mxu0 0.0
        %1774 = vmatpush1.msra.mxu0 %v1768
        %1775 = vmatprep.subr.mxu0 0.0
        %1776 = vmatpush1.msra.mxu0 0.0
        %1777 = vmatprep.subr.mxu0 0.0
        %1778 = vmatpush1.msra.mxu0 0.0
        %1779 = vmatprep.subr.mxu0 0.0
        %1780 = vmatpush1.msra.mxu0 0.0
        %1781 = vmatprep.subr.mxu0 0.0
        %1782 = vmatpush1.msra.mxu0 0.0
        %1783 = vmatprep.subr.mxu0 0.0
        %1784 = vmatpush1.msra.mxu0 0.0
        %1785 = vmatprep.subr.mxu0 0.0
        %1786 = vmatpush1.msra.mxu0 0.0
        %1787 = vmatprep.subr.mxu0 0.0
        %1788 = vmatpush1.msra.mxu0 0.0
        %1789 = vmatprep.subr.mxu0 0.0
        %1790 = vmatpush1.msra.mxu0 0.0
        %1791 = vmatprep.subr.mxu0 0.0
        %1792 = vmatpush1.msra.mxu0 0.0
        %1793 = vmatprep.subr.mxu0 0.0
        %1794 = vmatpush1.msra.mxu0 0.0
        %1795 = vmatprep.subr.mxu0 0.0
        %1796 = vmatpush1.msra.mxu0 0.0
        %1797 = vmatprep.subr.mxu0 0.0
        %1798 = vmatpush1.msra.mxu0 0.0
        %1799 = vmatprep.subr.mxu0 0.0
        %1800 = vmatpush1.msra.mxu0 0.0
        %1801 = vmatprep.subr.mxu0 0.0
        %1802 = vmatpush1.msra.mxu0 0.0
        %1803 = vmatprep.subr.mxu0 0.0
        %1804 = vmatpush1.msra.mxu0 0.0
        %1805 = vmatprep.subr.mxu0 0.0
        %1806 = vmatpush1.msra.mxu0 0.0
        %1807 = vmatprep.subr.mxu0 0.0
        %1808 = vmatpush1.msra.mxu0 0.0
        %1809 = vmatprep.subr.mxu0 0.0
        %1810 = vmatpush1.msra.mxu0 0.0
        %1811 = vmatprep.subr.mxu0 0.0
        %1812 = vmatpush1.msra.mxu0 0.0
        %1813 = vmatprep.subr.mxu0 0.0
        %1814 = vmatpush1.msra.mxu0 0.0
        %1815 = vmatprep.subr.mxu0 0.0
        %1816 = vmatpush1.msra.mxu0 0.0
        %1817 = vmatprep.subr.mxu0 0.0
        %1818 = vmatpush1.msra.mxu0 0.0
        %1819 = vmatprep.subr.mxu0 0.0
        %1820 = vmatpush1.msra.mxu0 0.0
        %1821 = vmatprep.subr.mxu0 0.0
        %1822 = vmatpush1.msra.mxu0 0.0
        %1823 = vmatprep.subr.mxu0 0.0
        %1824 = vmatpush1.msra.mxu0 0.0
        %1825 = vmatprep.subr.mxu0 0.0
        %1826 = vmatpush1.msra.mxu0 0.0
        %1827 = vmatprep.subr.mxu0 0.0
        %1828 = vmatpush1.msra.mxu0 0.0
        %1829 = vmatprep.subr.mxu0 0.0
        %1830 = vmatpush1.msra.mxu0 0.0
        %1831 = vmatprep.subr.mxu0 0.0
        %1832 = vmatpush1.msra.mxu0 0.0
        %1833 = vmatprep.subr.mxu0 0.0
        %1834 = vmatpush1.msra.mxu0 0.0
        %1835 = vmatprep.subr.mxu0 0.0
        %1836 = vmatpush1.msra.mxu0 0.0
        %1837 = vmatprep.mubr.f32.mxu0 0.0
        %1838 = vmatmul.mubr.f32.gmra.mrb[0].mxu0 %v1771
        %v1839 = vpop.f32.mrb[0].mxu0
        %v1840 = vadd.f32 0.0, %v1839
        %v1841 = vpop.f32.mrb[0].mxu0
        %1842 = vdwg.mxu0
        %1843 = vrot.lane.b32.xlu0 %v1340, 64
        %v1844 = vpop.permute.xlu0 %1843
        %v1847 = vsel %vm507, %v1689, 0
        %1849 = vmatprep.subr.mxu0 0.0
        %1850 = vmatpush1.msra.mxu0 %v1844
        %1851 = vmatprep.subr.mxu0 0.0
        %1852 = vmatpush1.msra.mxu0 0.0
        %1853 = vmatprep.subr.mxu0 0.0
        %1854 = vmatpush1.msra.mxu0 0.0
        %1855 = vmatprep.subr.mxu0 0.0
        %1856 = vmatpush1.msra.mxu0 0.0
        %1857 = vmatprep.subr.mxu0 0.0
        %1858 = vmatpush1.msra.mxu0 0.0
        %1859 = vmatprep.subr.mxu0 0.0
        %1860 = vmatpush1.msra.mxu0 0.0
        %1861 = vmatprep.subr.mxu0 0.0
        %1862 = vmatpush1.msra.mxu0 0.0
        %1863 = vmatprep.subr.mxu0 0.0
        %1864 = vmatpush1.msra.mxu0 0.0
        %1865 = vmatprep.subr.mxu0 0.0
        %1866 = vmatpush1.msra.mxu0 0.0
        %1867 = vmatprep.subr.mxu0 0.0
        %1868 = vmatpush1.msra.mxu0 0.0
        %1869 = vmatprep.subr.mxu0 0.0
        %1870 = vmatpush1.msra.mxu0 0.0
        %1871 = vmatprep.subr.mxu0 0.0
        %1872 = vmatpush1.msra.mxu0 0.0
        %1873 = vmatprep.subr.mxu0 0.0
        %1874 = vmatpush1.msra.mxu0 0.0
        %1875 = vmatprep.subr.mxu0 0.0
        %1876 = vmatpush1.msra.mxu0 0.0
        %1877 = vmatprep.subr.mxu0 0.0
        %1878 = vmatpush1.msra.mxu0 0.0
        %1879 = vmatprep.subr.mxu0 0.0
        %1880 = vmatpush1.msra.mxu0 0.0
        %1881 = vmatprep.subr.mxu0 0.0
        %1882 = vmatpush1.msra.mxu0 0.0
        %1883 = vmatprep.subr.mxu0 0.0
        %1884 = vmatpush1.msra.mxu0 0.0
        %1885 = vmatprep.subr.mxu0 0.0
        %1886 = vmatpush1.msra.mxu0 0.0
        %1887 = vmatprep.subr.mxu0 0.0
        %1888 = vmatpush1.msra.mxu0 0.0
        %1889 = vmatprep.subr.mxu0 0.0
        %1890 = vmatpush1.msra.mxu0 0.0
        %1891 = vmatprep.subr.mxu0 0.0
        %1892 = vmatpush1.msra.mxu0 0.0
        %1893 = vmatprep.subr.mxu0 0.0
        %1894 = vmatpush1.msra.mxu0 0.0
        %1895 = vmatprep.subr.mxu0 0.0
        %1896 = vmatpush1.msra.mxu0 0.0
        %1897 = vmatprep.subr.mxu0 0.0
        %1898 = vmatpush1.msra.mxu0 0.0
        %1899 = vmatprep.subr.mxu0 0.0
        %1900 = vmatpush1.msra.mxu0 0.0
        %1901 = vmatprep.subr.mxu0 0.0
        %1902 = vmatpush1.msra.mxu0 0.0
        %1903 = vmatprep.subr.mxu0 0.0
        %1904 = vmatpush1.msra.mxu0 0.0
        %1905 = vmatprep.subr.mxu0 0.0
        %1906 = vmatpush1.msra.mxu0 0.0
        %1907 = vmatprep.subr.mxu0 0.0
        %1908 = vmatpush1.msra.mxu0 0.0
        %1909 = vmatprep.subr.mxu0 0.0
        %1910 = vmatpush1.msra.mxu0 0.0
        %1911 = vmatprep.subr.mxu0 0.0
        %1912 = vmatpush1.msra.mxu0 0.0
        %1913 = vmatprep.mubr.f32.mxu0 0.0
        %1914 = vmatmul.mubr.f32.gmra.mrb[0].mxu0 %v1847
        %v1915 = vpop.f32.mrb[0].mxu0
        %v1916 = vadd.f32 0.0, %v1915
        %v1917 = vpop.f32.mrb[0].mxu0
        %1918 = vdwg.mxu0
        %1919 = vrot.lane.b32.xlu0 %v1342, 64
        %v1920 = vpop.permute.xlu0 %1919
        %v1923 = vsel %vm507, %v1690, 0
        %1925 = vmatprep.subr.mxu0 0.0
        %1926 = vmatpush1.msra.mxu0 %v1920
        %1927 = vmatprep.subr.mxu0 0.0
        %1928 = vmatpush1.msra.mxu0 0.0
        %1929 = vmatprep.subr.mxu0 0.0
        %1930 = vmatpush1.msra.mxu0 0.0
        %1931 = vmatprep.subr.mxu0 0.0
        %1932 = vmatpush1.msra.mxu0 0.0
        %1933 = vmatprep.subr.mxu0 0.0
        %1934 = vmatpush1.msra.mxu0 0.0
        %1935 = vmatprep.subr.mxu0 0.0
        %1936 = vmatpush1.msra.mxu0 0.0
        %1937 = vmatprep.subr.mxu0 0.0
        %1938 = vmatpush1.msra.mxu0 0.0
        %1939 = vmatprep.subr.mxu0 0.0
        %1940 = vmatpush1.msra.mxu0 0.0
        %1941 = vmatprep.subr.mxu0 0.0
        %1942 = vmatpush1.msra.mxu0 0.0
        %1943 = vmatprep.subr.mxu0 0.0
        %1944 = vmatpush1.msra.mxu0 0.0
        %1945 = vmatprep.subr.mxu0 0.0
        %1946 = vmatpush1.msra.mxu0 0.0
        %1947 = vmatprep.subr.mxu0 0.0
        %1948 = vmatpush1.msra.mxu0 0.0
        %1949 = vmatprep.subr.mxu0 0.0
        %1950 = vmatpush1.msra.mxu0 0.0
        %1951 = vmatprep.subr.mxu0 0.0
        %1952 = vmatpush1.msra.mxu0 0.0
        %1953 = vmatprep.subr.mxu0 0.0
        %1954 = vmatpush1.msra.mxu0 0.0
        %1955 = vmatprep.subr.mxu0 0.0
        %1956 = vmatpush1.msra.mxu0 0.0
        %1957 = vmatprep.subr.mxu0 0.0
        %1958 = vmatpush1.msra.mxu0 0.0
        %1959 = vmatprep.subr.mxu0 0.0
        %1960 = vmatpush1.msra.mxu0 0.0
        %1961 = vmatprep.subr.mxu0 0.0
        %1962 = vmatpush1.msra.mxu0 0.0
        %1963 = vmatprep.subr.mxu0 0.0
        %1964 = vmatpush1.msra.mxu0 0.0
        %1965 = vmatprep.subr.mxu0 0.0
        %1966 = vmatpush1.msra.mxu0 0.0
        %1967 = vmatprep.subr.mxu0 0.0
        %1968 = vmatpush1.msra.mxu0 0.0
        %1969 = vmatprep.subr.mxu0 0.0
        %1970 = vmatpush1.msra.mxu0 0.0
        %1971 = vmatprep.subr.mxu0 0.0
        %1972 = vmatpush1.msra.mxu0 0.0
        %1973 = vmatprep.subr.mxu0 0.0
        %1974 = vmatpush1.msra.mxu0 0.0
        %1975 = vmatprep.subr.mxu0 0.0
        %1976 = vmatpush1.msra.mxu0 0.0
        %1977 = vmatprep.subr.mxu0 0.0
        %1978 = vmatpush1.msra.mxu0 0.0
        %1979 = vmatprep.subr.mxu0 0.0
        %1980 = vmatpush1.msra.mxu0 0.0
        %1981 = vmatprep.subr.mxu0 0.0
        %1982 = vmatpush1.msra.mxu0 0.0
        %1983 = vmatprep.subr.mxu0 0.0
        %1984 = vmatpush1.msra.mxu0 0.0
        %1985 = vmatprep.subr.mxu0 0.0
        %1986 = vmatpush1.msra.mxu0 0.0
        %1987 = vmatprep.subr.mxu0 0.0
        %1988 = vmatpush1.msra.mxu0 0.0
        %1989 = vmatprep.mubr.f32.mxu0 0.0
        %1990 = vmatmul.mubr.f32.gmra.mrb[0].mxu0 %v1923
        %v1991 = vpop.f32.mrb[0].mxu0
        %v1992 = vadd.f32 0.0, %v1991
        %v1993 = vpop.f32.mrb[0].mxu0
        %1994 = vdwg.mxu0
        %1996 = vrot.lane.b32.xlu0 %v1840, 8
        %v1997 = vpop.permute.xlu0 %1996
        %2000 = vrot.lane.b32.xlu0 %v1916, 16
        %v2001 = vpop.permute.xlu0 %2000
        %2004 = vrot.lane.b32.xlu0 %v1992, 24
        %v2005 = vpop.permute.xlu0 %2004
        %v2007 = vsel %vm507, %v1764, %v1997
        %v2008 = vsel %vm415, %v2007, %v2001
        %v2009 = vsel %vm1166, %v2008, %v2005
        %v2011 = vsel %vm322, %v2009, 0
        %2013 = vmatprep.subr.mxu0 0.0
        %2014 = vmatpush1.msra.mxu0 %v1332
        %2015 = vmatprep.subr.mxu0 0.0
        %2016 = vmatpush1.msra.mxu0 %v1333
        %2017 = vmatprep.subr.mxu0 0.0
        %2018 = vmatpush1.msra.mxu0 %v1334
        %2019 = vmatprep.subr.mxu0 0.0
        %2020 = vmatpush1.msra.mxu0 %v1335
        %2021 = vmatprep.subr.mxu0 0.0
        %2022 = vmatpush1.msra.mxu0 0.0
        %2023 = vmatprep.subr.mxu0 0.0
        %2024 = vmatpush1.msra.mxu0 0.0
        %2025 = vmatprep.subr.mxu0 0.0
        %2026 = vmatpush1.msra.mxu0 0.0
        %2027 = vmatprep.subr.mxu0 0.0
        %2028 = vmatpush1.msra.mxu0 0.0
        %2029 = vmatprep.subr.mxu0 0.0
        %2030 = vmatpush1.msra.mxu0 0.0
        %2031 = vmatprep.subr.mxu0 0.0
        %2032 = vmatpush1.msra.mxu0 0.0
        %2033 = vmatprep.subr.mxu0 0.0
        %2034 = vmatpush1.msra.mxu0 0.0
        %2035 = vmatprep.subr.mxu0 0.0
        %2036 = vmatpush1.msra.mxu0 0.0
        %2037 = vmatprep.subr.mxu0 0.0
        %2038 = vmatpush1.msra.mxu0 0.0
        %2039 = vmatprep.subr.mxu0 0.0
        %2040 = vmatpush1.msra.mxu0 0.0
        %2041 = vmatprep.subr.mxu0 0.0
        %2042 = vmatpush1.msra.mxu0 0.0
        %2043 = vmatprep.subr.mxu0 0.0
        %2044 = vmatpush1.msra.mxu0 0.0
        %2045 = vmatprep.subr.mxu0 0.0
        %2046 = vmatpush1.msra.mxu0 0.0
        %2047 = vmatprep.subr.mxu0 0.0
        %2048 = vmatpush1.msra.mxu0 0.0
        %2049 = vmatprep.subr.mxu0 0.0
        %2050 = vmatpush1.msra.mxu0 0.0
        %2051 = vmatprep.subr.mxu0 0.0
        %2052 = vmatpush1.msra.mxu0 0.0
        %2053 = vmatprep.subr.mxu0 0.0
        %2054 = vmatpush1.msra.mxu0 0.0
        %2055 = vmatprep.subr.mxu0 0.0
        %2056 = vmatpush1.msra.mxu0 0.0
        %2057 = vmatprep.subr.mxu0 0.0
        %2058 = vmatpush1.msra.mxu0 0.0
        %2059 = vmatprep.subr.mxu0 0.0
        %2060 = vmatpush1.msra.mxu0 0.0
        %2061 = vmatprep.subr.mxu0 0.0
        %2062 = vmatpush1.msra.mxu0 0.0
        %2063 = vmatprep.subr.mxu0 0.0
        %2064 = vmatpush1.msra.mxu0 0.0
        %2065 = vmatprep.subr.mxu0 0.0
        %2066 = vmatpush1.msra.mxu0 0.0
        %2067 = vmatprep.subr.mxu0 0.0
        %2068 = vmatpush1.msra.mxu0 0.0
        %2069 = vmatprep.subr.mxu0 0.0
        %2070 = vmatpush1.msra.mxu0 0.0
        %2071 = vmatprep.subr.mxu0 0.0
        %2072 = vmatpush1.msra.mxu0 0.0
        %2073 = vmatprep.subr.mxu0 0.0
        %2074 = vmatpush1.msra.mxu0 0.0
        %2075 = vmatprep.subr.mxu0 0.0
        %2076 = vmatpush1.msra.mxu0 0.0
        %2077 = vmatprep.mubr.f32.mxu0 0.0
        %2078 = vmatmul.mubr.f32.gmra.mrb[0].mxu0 %v2011
        %v2079 = vpop.f32.mrb[0].mxu0
        %v2080 = vadd.f32 0.0, %v2079
        %v2081 = vpop.f32.mrb[0].mxu0
        %2082 = vdwg.mxu0
        %v2083 = vadd.f32 %v1241, %v2080
        %v2084 = vmul.f32 %v2083, %v2083
        %v2085 = vsel %vm322, %v2084, 0.0
        %2086 = vadd.xlane.f32.xlu0 %v2085
        %v2087 = vpop.xlane.xlu0 %2086
        %v2088 = vmul.f32 %v2087, %v326
        %v2089 = vadd.f32 %v2088, 1e-06
        %v2090 = vrsqrt.pop %v2089
        %v2091 = vmul.f32 %v2083, %v2090
        %v2092 = vlaneseq
        %v2093 = vshrl.u32 %v2092, 7
        %v2094 = vsub.s32 2, %v2093
        %v2095 = vrot.slane %v320, %v2094
        %v2096 = vmul.f32 %v2091, %v2095
        %v2097 = vld [vmem:[%s3 + $0x20] sm:$0xff]
        %v2098 = vld [vmem:[%s3 + $0x48] sm:$0xff]
        %v2099 = vld [vmem:[%s3 + $0x70] sm:$0xff]
        %v2100 = vld [vmem:[%s3 + $0x98] sm:$0xff]
        %v2102 = vsel %vm322, %v2096, 0
        %2104 = vmatprep.subr.mxu0 0.0
        %2105 = vmatpush1.msra.mxu0 %v2097
        %2106 = vmatprep.subr.mxu0 0.0
        %2107 = vmatpush1.msra.mxu0 %v2098
        %2108 = vmatprep.subr.mxu0 0.0
        %2109 = vmatpush1.msra.mxu0 %v2099
        %2110 = vmatprep.subr.mxu0 0.0
        %2111 = vmatpush1.msra.mxu0 %v2100
        %2112 = vmatprep.subr.mxu0 0.0
        %2113 = vmatpush1.msra.mxu0 0.0
        %2114 = vmatprep.subr.mxu0 0.0
        %2115 = vmatpush1.msra.mxu0 0.0
        %2116 = vmatprep.subr.mxu0 0.0
        %2117 = vmatpush1.msra.mxu0 0.0
        %2118 = vmatprep.subr.mxu0 0.0
        %2119 = vmatpush1.msra.mxu0 0.0
        %2120 = vmatprep.subr.mxu0 0.0
        %2121 = vmatpush1.msra.mxu0 0.0
        %2122 = vmatprep.subr.mxu0 0.0
        %2123 = vmatpush1.msra.mxu0 0.0
        %2124 = vmatprep.subr.mxu0 0.0
        %2125 = vmatpush1.msra.mxu0 0.0
        %2126 = vmatprep.subr.mxu0 0.0
        %2127 = vmatpush1.msra.mxu0 0.0
        %2128 = vmatprep.subr.mxu0 0.0
        %2129 = vmatpush1.msra.mxu0 0.0
        %2130 = vmatprep.subr.mxu0 0.0
        %2131 = vmatpush1.msra.mxu0 0.0
        %2132 = vmatprep.subr.mxu0 0.0
        %2133 = vmatpush1.msra.mxu0 0.0
        %2134 = vmatprep.subr.mxu0 0.0
        %2135 = vmatpush1.msra.mxu0 0.0
        %2136 = vmatprep.subr.mxu0 0.0
        %2137 = vmatpush1.msra.mxu0 0.0
        %2138 = vmatprep.subr.mxu0 0.0
        %2139 = vmatpush1.msra.mxu0 0.0
        %2140 = vmatprep.subr.mxu0 0.0
        %2141 = vmatpush1.msra.mxu0 0.0
        %2142 = vmatprep.subr.mxu0 0.0
        %2143 = vmatpush1.msra.mxu0 0.0
        %2144 = vmatprep.subr.mxu0 0.0
        %2145 = vmatpush1.msra.mxu0 0.0
        %2146 = vmatprep.subr.mxu0 0.0
        %2147 = vmatpush1.msra.mxu0 0.0
        %2148 = vmatprep.subr.mxu0 0.0
        %2149 = vmatpush1.msra.mxu0 0.0
        %2150 = vmatprep.subr.mxu0 0.0
        %2151 = vmatpush1.msra.mxu0 0.0
        %2152 = vmatprep.subr.mxu0 0.0
        %2153 = vmatpush1.msra.mxu0 0.0
        %2154 = vmatprep.subr.mxu0 0.0
        %2155 = vmatpush1.msra.mxu0 0.0
        %2156 = vmatprep.subr.mxu0 0.0
        %2157 = vmatpush1.msra.mxu0 0.0
        %2158 = vmatprep.subr.mxu0 0.0
        %2159 = vmatpush1.msra.mxu0 0.0
        %2160 = vmatprep.subr.mxu0 0.0
        %2161 = vmatpush1.msra.mxu0 0.0
        %2162 = vmatprep.subr.mxu0 0.0
        %2163 = vmatpush1.msra.mxu0 0.0
        %2164 = vmatprep.subr.mxu0 0.0
        %2165 = vmatpush1.msra.mxu0 0.0
        %2166 = vmatprep.subr.mxu0 0.0
        %2167 = vmatpush1.msra.mxu0 0.0
        %2168 = vmatprep.mubr.f32.mxu0 0.0
        %2169 = vmatmul.mubr.f32.gmra.mrb[0].mxu0 %v2102
        %v2170 = vpop.f32.mrb[0].mxu0
        %v2171 = vadd.f32 0.0, %v2170
        %v2172 = vpop.f32.mrb[0].mxu0
        %2173 = vdwg.mxu0
        %v2174 = vxor.u32 %v2171, 2147483648
        %v2175 = vmul.f32 %v2174, 1.442695
        %v2176 = vpow.pop %v2175
        %v2177 = vadd.f32 %v2176, 1.0
        %v2178 = vrcp.pop %v2177
        %v2179 = vmul.f32 1.0, %v2178
        %v2180 = vmul.f32 %v2171, %v2179
        %v2181 = vld [vmem:[%s5] sm:$0xff]
        %v2182 = vld [vmem:[%s5 + $0x8] sm:$0xff]
        %v2183 = vld [vmem:[%s5 + $0x10] sm:$0xff]
        %v2184 = vld [vmem:[%s5 + $0x18] sm:$0xff]
        %v2185 = vld [vmem:[%s5 + $0x20] sm:$0xff]
        %v2186 = vld [vmem:[%s5 + $0x28] sm:$0xff]
        %v2187 = vld [vmem:[%s5 + $0x30] sm:$0xff]
        %v2188 = vld [vmem:[%s5 + $0x38] sm:$0xff]
        %v2189 = vld [vmem:[%s5 + $0x40] sm:$0xff]
        %v2190 = vld [vmem:[%s5 + $0x48] sm:$0xff]
        %v2191 = vld [vmem:[%s5 + $0x50] sm:$0xff]
        %v2192 = vld [vmem:[%s5 + $0x58] sm:$0xff]
        %v2193 = vld [vmem:[%s5 + $0x60] sm:$0xff]
        %v2194 = vld [vmem:[%s5 + $0x68] sm:$0xff]
        %v2195 = vld [vmem:[%s5 + $0x70] sm:$0xff]
        %v2196 = vld [vmem:[%s5 + $0x78] sm:$0xff]
        %2197 = vmatprep.subr.mxu0 0.0
        %2198 = vmatpush1.msra.mxu0 %v2181
        %2199 = vmatprep.subr.mxu0 0.0
        %2200 = vmatpush1.msra.mxu0 %v2182
        %2201 = vmatprep.subr.mxu0 0.0
        %2202 = vmatpush1.msra.mxu0 %v2183
        %2203 = vmatprep.subr.mxu0 0.0
        %2204 = vmatpush1.msra.mxu0 %v2184
        %2205 = vmatprep.subr.mxu0 0.0
        %2206 = vmatpush1.msra.mxu0 %v2185
        %2207 = vmatprep.subr.mxu0 0.0
        %2208 = vmatpush1.msra.mxu0 %v2186
        %2209 = vmatprep.subr.mxu0 0.0
        %2210 = vmatpush1.msra.mxu0 %v2187
        %2211 = vmatprep.subr.mxu0 0.0
        %2212 = vmatpush1.msra.mxu0 %v2188
        %2213 = vmatprep.subr.mxu0 0.0
        %2214 = vmatpush1.msra.mxu0 %v2189
        %2215 = vmatprep.subr.mxu0 0.0
        %2216 = vmatpush1.msra.mxu0 %v2190
        %2217 = vmatprep.subr.mxu0 0.0
        %2218 = vmatpush1.msra.mxu0 %v2191
        %2219 = vmatprep.subr.mxu0 0.0
        %2220 = vmatpush1.msra.mxu0 %v2192
        %2221 = vmatprep.subr.mxu0 0.0
        %2222 = vmatpush1.msra.mxu0 %v2193
        %2223 = vmatprep.subr.mxu0 0.0
        %2224 = vmatpush1.msra.mxu0 %v2194
        %2225 = vmatprep.subr.mxu0 0.0
        %2226 = vmatpush1.msra.mxu0 %v2195
        %2227 = vmatprep.subr.mxu0 0.0
        %2228 = vmatpush1.msra.mxu0 %v2196
        %2229 = vmatprep.subr.mxu0 0.0
        %2230 = vmatpush1.msra.mxu0 0.0
        %2231 = vmatprep.subr.mxu0 0.0
        %2232 = vmatpush1.msra.mxu0 0.0
        %2233 = vmatprep.subr.mxu0 0.0
        %2234 = vmatpush1.msra.mxu0 0.0
        %2235 = vmatprep.subr.mxu0 0.0
        %2236 = vmatpush1.msra.mxu0 0.0
        %2237 = vmatprep.subr.mxu0 0.0
        %2238 = vmatpush1.msra.mxu0 0.0
        %2239 = vmatprep.subr.mxu0 0.0
        %2240 = vmatpush1.msra.mxu0 0.0
        %2241 = vmatprep.subr.mxu0 0.0
        %2242 = vmatpush1.msra.mxu0 0.0
        %2243 = vmatprep.subr.mxu0 0.0
        %2244 = vmatpush1.msra.mxu0 0.0
        %2245 = vmatprep.subr.mxu0 0.0
        %2246 = vmatpush1.msra.mxu0 0.0
        %2247 = vmatprep.subr.mxu0 0.0
        %2248 = vmatpush1.msra.mxu0 0.0
        %2249 = vmatprep.subr.mxu0 0.0
        %2250 = vmatpush1.msra.mxu0 0.0
        %2251 = vmatprep.subr.mxu0 0.0
        %2252 = vmatpush1.msra.mxu0 0.0
        %2253 = vmatprep.subr.mxu0 0.0
        %2254 = vmatpush1.msra.mxu0 0.0
        %2255 = vmatprep.subr.mxu0 0.0
        %2256 = vmatpush1.msra.mxu0 0.0
        %2257 = vmatprep.subr.mxu0 0.0
        %2258 = vmatpush1.msra.mxu0 0.0
        %2259 = vmatprep.subr.mxu0 0.0
        %2260 = vmatpush1.msra.mxu0 0.0
        %2261 = vmatprep.mubr.f32.mxu0 0.0
        %2262 = vmatmul.mubr.f32.gmra.mrb[0].mxu0 %v2180
        %v2263 = vpop.f32.mrb[0].mxu0
        %v2264 = vadd.f32 0.0, %v2263
        %v2265 = vpop.f32.mrb[0].mxu0
        %2266 = vdwg.mxu0
        %v2267 = vadd.f32 %v2083, %v2264
        %2268 = vst.msk [vmem:[%s317] sm:$0xff] %vm322, %v2267
        %s2269 = sand.u32 %s170, 1
        %s2270 = scalar_lea.sflag [#allocation4], %s2269
        %s2271 = sand.u32 %s170, 1
        %s2272 = smul.addr %s2271, 8
        %s2273 = scalar_lea.vmem [#allocation8], %s2272
        // Predicated region
        $region57: #{tpu_custom_call.1} parent=43 // pred_check
          %p2274 = pneg %p180
        $region58: #{tpu_custom_call.1} parent=43 // pred_check_branch
          %2276 = sbr.rel (%p2274) target = $region60
        $region59: #{tpu_custom_call.1} parent=43 // pred_region
          %s2278 = ssub.s32 128, 128
          %2279 = vsyncadd %s2270, %s2278
          %s2280 = smul.addr %s26, 128
          %s2281 = scalar_lea.hbm %s6, %s2280
          %s2283 = sshll.u32 %s2273, 4
          %s2284 = int_to_ptr.vmem [resolvable:$true] %s2283
          %2286 = dma.vmem_to_hbm [thread:$0]  %s2284, 128, %s2281, %s2270
        $region60: #{tpu_custom_call.1} parent=43 // pred_fallthru
          _
      $region44: #{tpu_custom_call.1} parent=5 // pred_fallthru
        _
      %p2287 = scmp.le.s32.totalorder 2, %s21
      // Predicated region
      $region61: #{tpu_custom_call.1} parent=5 // pred_check
        %p2288 = pneg %p2287
      $region62: #{tpu_custom_call.1} parent=5 // pred_check_branch
        %2290 = sbr.rel (%p2288) target = $region64
      $region63: #{tpu_custom_call.1} parent=5 // pred_region
        %s2291 = ssub.s32 %s21, 2
        // Predicated region
        $region65: #{tpu_custom_call.1} parent=63 // pred_check
          %p2292 = pneg %p186
        $region66: #{tpu_custom_call.1} parent=63 // pred_check_branch
          %2294 = sbr.rel (%p2292) target = $region68
        $region67: #{tpu_custom_call.1} parent=63 // pred_region
          %s2295 = sand.u32 %s171, 1
          %s2296 = scalar_lea.sflag [#allocation4], %s2295
          %s2297 = sand.u32 %s171, 1
          %s2298 = smul.addr %s2297, 8
          %s2299 = scalar_lea.vmem [#allocation8], %s2298
          %2300 = dma.done %s2296, 128
        $region68: #{tpu_custom_call.1} parent=63 // pred_fallthru
          _
      $region64: #{tpu_custom_call.1} parent=5 // pred_fallthru
        _
    $region6: #{tpu_custom_call.1} parent=1 // loop_footer
      %s25 = sadd.s32 1, %s21
    $region7: #{tpu_custom_call.1} parent=1 // loop_footer_branch
      %20 = sbr.rel target = $region3
    $region8: #{tpu_custom_call.1} parent=1 // loop_exit
      _
    %2301 = vsyncpa [#allocation3], 1
    %s2302 = scalar_lea.sflag [#allocation3], 1
    %2303 = vsyncpa %s2302, 1
    %2304 = vsyncpa [#allocation6], 1
    %s2305 = scalar_lea.sflag [#allocation6], 1
    %2306 = vsyncpa %s2305, 1
    %2307 = vsyncpa [#allocation4], 1
    %s2308 = scalar_lea.sflag [#allocation4], 1
    %2309 = vsyncpa %s2308, 1

</llo_original>
